<compile_context>
chip_gen: v7x
topology: tpu7x:2x2x1
jax: 0.10.0
libtpu: 0.0.40
codegen_flags: <defaults>
</compile_context>

<pallas_src>
import jax
import jax.numpy as jnp
from jax.experimental import pallas as pl
from jax.experimental.pallas import tpu as pltpu

BN_EPS = 1e-5


def gap_bn_kernel(x_ref, scale_ref, bias_ref, o_ref):
    # x_ref: (Bt, Ct, HW) ; scale/bias: (1, Ct) ; o_ref: (Bt, Ct)
    x = x_ref[...].astype(jnp.float32)
    s = jnp.sum(x, axis=-1)                               # lane reduce (XLU) -> (Bt, Ct)
    o_ref[...] = (s * scale_ref[...] + bias_ref[...]).astype(o_ref.dtype)


def _pick_bt(B):
    # 8 rows keeps the output tile's sublane dim aligned; full-B fallback.
    if B > 8 and B % 8 == 0:
        return 8
    return B


def _pick_ct(C, bt, HW, itemsize, tile_budget_bytes=4 << 20):
    # Largest C tile (multiple of 128, dividing C) whose x tile fits the
    # per-buffer VMEM budget; full-C fallback when C isn't 128-aligned.
    if C % 128 != 0:
        return C
    ct = C
    while ct % 256 == 0 and bt * ct * HW * itemsize > tile_budget_bytes:
        ct //= 2
    return ct


def baseline_head(x_nchw, gamma, beta, running_mean, running_var, *, bt=None, ct=None):
    """x_nchw: (B, C, H, W) backbone feature map -> feat: (B, C) float32."""
    B, C, H, W = x_nchw.shape
    HW = H * W

    # Native layout: (B, C, HW).  Reshape is free (no relayout); the feature
    # map is read from HBM exactly once, by the kernel's own pipelined DMA.
    x = x_nchw.reshape(B, C, HW)

    bt = _pick_bt(B) if bt is None else bt
    ct = _pick_ct(C, bt, HW, x.dtype.itemsize) if ct is None else ct
    assert B % bt == 0 and C % ct == 0, "tile sizes must divide (B, C)"
    assert bt == B or bt % 8 == 0, "B tile must be full B or a multiple of 8"
    assert ct == C or ct % 128 == 0, "C tile must be full C or a multiple of 128"

    # Fused BN(1d, inference) constants, with the 1/HW of the mean folded in.
    inv_std = jax.lax.rsqrt(running_var.astype(jnp.float32) + BN_EPS)
    g32 = gamma.astype(jnp.float32)
    scale = (g32 * inv_std / HW).reshape(1, C)
    bias = (beta.astype(jnp.float32)
            - running_mean.astype(jnp.float32) * g32 * inv_std).reshape(1, C)

    grid = (C // ct, B // bt)   # B fastest -> (1, ct) BN-param blocks stay resident.

    return pl.pallas_call(
        gap_bn_kernel,
        out_shape=jax.ShapeDtypeStruct((B, C), jnp.float32),
        grid=grid,
        in_specs=[
            pl.BlockSpec((bt, ct, HW), lambda ci, bi: (bi, ci, 0)),
            pl.BlockSpec((1, ct), lambda ci, bi: (0, ci)),
            pl.BlockSpec((1, ct), lambda ci, bi: (0, ci)),
        ],
        out_specs=pl.BlockSpec((bt, ct), lambda ci, bi: (bi, ci)),
        compiler_params=pltpu.CompilerParams(
            dimension_semantics=("parallel", "parallel"),
        ),
    )(x, scale, bias)


def _reference(x_nchw, gamma, beta, running_mean, running_var):
    B, C, H, W = x_nchw.shape
    gap = jnp.mean(x_nchw.astype(jnp.float32).reshape(B, C, H * W), axis=-1)
    return (gap - running_mean) * jax.lax.rsqrt(running_var + BN_EPS) * gamma + beta


if __name__ == "__main__":
    # Small stand-in shapes (C=256 stands in for in_planes=2048); chosen so the
    # explicit (bt=8, ct=128) override exercises a 2x2 tile grid.
    B, C, H, W = 16, 256, 8, 8
    key = jax.random.PRNGKey(0)
    kx, kg, kb, km, kv = jax.random.split(key, 5)

    x = jax.random.normal(kx, (B, C, H, W), dtype=jnp.float32)

    # Deterministic BatchNorm1d (bottleneck) parameters.
    gamma = 1.0 + 0.1 * jax.random.normal(kg, (C,), dtype=jnp.float32)
    beta = 0.1 * jax.random.normal(kb, (C,), dtype=jnp.float32)
    running_mean = 0.05 * jax.random.normal(km, (C,), dtype=jnp.float32)
    running_var = 1.0 + 0.1 * jax.random.uniform(kv, (C,), dtype=jnp.float32)

    feat_ref = _reference(x, gamma, beta, running_mean, running_var)

    # f32 path, explicit tiled grid (2x2 tiles).
    feat = jax.block_until_ready(
        baseline_head(x, gamma, beta, running_mean, running_var, bt=8, ct=128)
    )
    assert feat.shape == (B, C)
    assert jnp.allclose(feat, feat_ref, atol=1e-5, rtol=1e-5)

    # f32 path, auto tile selection.
    feat_auto = jax.block_until_ready(
        baseline_head(x, gamma, beta, running_mean, running_var)
    )
    assert jnp.allclose(feat_auto, feat_ref, atol=1e-5, rtol=1e-5)

    # bf16 feature map (halves HBM read bytes); f32 accumulation in-kernel.
    x_bf16 = x.astype(jnp.bfloat16)
    feat_bf = jax.block_until_ready(
        baseline_head(x_bf16, gamma, beta, running_mean, running_var, bt=8, ct=128)
    )
    feat_bf_ref = _reference(x_bf16, gamma, beta, running_mean, running_var)
    assert jnp.allclose(feat_bf, feat_bf_ref, atol=5e-2, rtol=5e-2)

    print("KERNEL_OK")
</pallas_src>

<mosaic_0001>
module attributes {stable_mosaic.version = 11 : i64} {
  func.func @gap_bn_kernel(%arg0: i32, %arg1: i32, %arg2: memref<8x128x64xf32, #tpu.memory_space<vmem>>, %arg3: memref<1x128xf32, #tpu.memory_space<vmem>>, %arg4: memref<1x128xf32, #tpu.memory_space<vmem>>, %arg5: memref<8x128xf32, #tpu.memory_space<vmem>>) attributes {dimension_semantics = [#tpu.dimension_semantics<parallel>, #tpu.dimension_semantics<parallel>], iteration_bounds = array<i64: 2, 2>, scalar_prefetch = 0 : i64, scratch_operands = 0 : i64, tpu.core_type = #tpu.core_type<tc>, window_params = [{transform_indices = @transform_0, window_bounds = array<i64: 8, 128, 64>}, {transform_indices = @transform_1, window_bounds = array<i64: 1, 128>}, {transform_indices = @transform_2, window_bounds = array<i64: 1, 128>}, {transform_indices = @transform_3, window_bounds = array<i64: 8, 128>}]} {
    %c0 = arith.constant 0 : index
    %c0_0 = arith.constant 0 : index
    %c0_1 = arith.constant 0 : index
    %0 = vector.load %arg2[%c0, %c0_0, %c0_1] : memref<8x128x64xf32, #tpu.memory_space<vmem>>, vector<8x128x64xf32>
    %cst = arith.constant dense<0.000000e+00> : vector<8x128xf32>
    %1 = vector.multi_reduction <add>, %0, %cst [2] : vector<8x128x64xf32> to vector<8x128xf32>
    %c0_2 = arith.constant 0 : index
    %c0_3 = arith.constant 0 : index
    %2 = vector.load %arg3[%c0_2, %c0_3] : memref<1x128xf32, #tpu.memory_space<vmem>>, vector<1x128xf32>
    %3 = vector.broadcast %2 : vector<1x128xf32> to vector<8x128xf32>
    %4 = arith.mulf %1, %3 : vector<8x128xf32>
    %c0_4 = arith.constant 0 : index
    %c0_5 = arith.constant 0 : index
    %5 = vector.load %arg4[%c0_4, %c0_5] : memref<1x128xf32, #tpu.memory_space<vmem>>, vector<1x128xf32>
    %6 = vector.broadcast %5 : vector<1x128xf32> to vector<8x128xf32>
    %7 = arith.addf %4, %6 : vector<8x128xf32>
    %c0_6 = arith.constant 0 : index
    %c0_7 = arith.constant 0 : index
    %8 = vector.load %arg5[%c0_6, %c0_7] : memref<8x128xf32, #tpu.memory_space<vmem>>, vector<8x128xf32>
    tpu.vector_store %arg5[%c0_6, %c0_7], %7 {strides = array<i32>} : memref<8x128xf32, #tpu.memory_space<vmem>>, vector<8x128xf32>,
    return
  }
  func.func @transform_0(%arg0: i32, %arg1: i32) -> (i32, i32, i32) {
    %c0_i32 = arith.constant 0 : i32
    %c0_i32_0 = arith.constant 0 : i32
    return %arg1, %arg0, %c0_i32 : i32, i32, i32
  }
  func.func @transform_1(%arg0: i32, %arg1: i32) -> (i32, i32) {
    %c0_i32 = arith.constant 0 : i32
    %c0_i32_0 = arith.constant 0 : i32
    return %c0_i32, %arg0 : i32, i32
  }
  func.func @transform_2(%arg0: i32, %arg1: i32) -> (i32, i32) {
    %c0_i32 = arith.constant 0 : i32
    %c0_i32_0 = arith.constant 0 : i32
    return %c0_i32, %arg0 : i32, i32
  }
  func.func @transform_3(%arg0: i32, %arg1: i32) -> (i32, i32) {
    %c0_i32 = arith.constant 0 : i32
    return %arg1, %arg0 : i32, i32
  }
}

</mosaic_0001>

<llo_original>
// kernel: tpu_custom_call.1
$region0: #{tpu_custom_call.1}
  #allocation0 [shape = 'u32[]', space=smem, size = 0x4, offset = 0x4, fixed_abs, tag = 'smem constant byte address 0x4 - core index']
  #allocation1 [shape = 'u32[144,128]{1,0:T(1,128)}', space=vmem, size = 0x12000, scoped, tag = 'internal scratch']
  %s0 = inlined_call_operand.vmem [shape: f32[16,256,64], index: 0, kind: input, shape index: {}]
  %s1 = inlined_call_operand.vmem [shape: f32[1,256], index: 1, kind: input, shape index: {}]
  %s2 = inlined_call_operand.vmem [shape: f32[1,256], index: 2, kind: input, shape index: {}]
  %s3 = inlined_call_operand.hbm [shape: f32[16,256], index: 3, kind: output, shape index: {}]
  %s4 = sld [smem:[#allocation0]]
  $region83: #{tpu_custom_call.1} parent=0
    _
  %s6 = ssub.s32 1, %s4
  %s7 = scalar_select 0, %s6, %s4
  $region1: #{tpu_custom_call.1} parent=0
    #allocation2 [shape = 'u8[1048576]{0}', space=vmem, size = 0x100000, scoped, tag = 'input window, operand 0']
    #allocation3 [shape = 'u8[8192]{0}', space=vmem, size = 0x2000, scoped, tag = 'output window, operand 0']
    #allocation4 [shape = 's32[2]{0}', space=sflag, size = 0x8, scoped, tag = 'scoped memory for tpu_custom_call.1']
    %8 = vsyncpa [#allocation4], 0
    %s9 = scalar_lea.sflag [#allocation4], 1
    %10 = vsyncpa %s9, 0
    loop: start=0, step=1, limit=6
    $region2: #{tpu_custom_call.1} parent=1 // loop_pre_header
      _
    $region3: #{tpu_custom_call.1} parent=1 // loop_header
      %s12 = sphi 0, %s16
      %p13 = scmp.ge.s32.totalorder %s12, 6
      %s19 = sphi 0, %s31
      %s20 = sphi 0, %s27
      %s21 = sphi 0, %s19
      %s22 = sphi 0, %s20
      %s23 = sphi 0, %s21
      %s24 = sphi 0, %s22
      %s36 = sphi 0, %s38
      %s39 = sphi 0, %s36
      %s40 = sphi 0, %s39
      %s56 = sphi 0, %s40
      %s62 = sphi 0, %s64
      %s65 = sphi 0, %s62
      %s66 = sphi 0, %s65
      %s82 = sphi 0, %s66
      %s88 = sphi 0, %s90
      %s91 = sphi 0, %s88
      %s92 = sphi 0, %s91
      %s108 = sphi 0, %s92
      %s116 = sphi 0, %s118
      %s119 = sphi 0, %s116
      %s120 = sphi 0, %s119
      %s136 = sphi 0, %s120
    $region4: #{tpu_custom_call.1} parent=1 // loop_header_branch
      %15 = sbr.rel (%p13) target = $region8
    $region5: #{tpu_custom_call.1} parent=1 // loop_body
      %s17 = ssub.s32 %s12, 1
      %s18 = ssub.s32 %s12, 2
      %s25 = sadd.s32 1, %s20
      %p26 = scmp.ge.s32.totalorder %s25, 2
      %s27 = scalar_select %p26, 0, %s25
      %s28 = sadd.s32 1, %s19
      %s29 = scalar_select %p26, %s28, %s19
      %p30 = scmp.ge.s32.totalorder %s29, 2
      %s31 = scalar_select %p30, 0, %s29
      %s32 = ssub.s32 %s20, %s27
      %s33 = ssub.s32 %s19, %s31
      %s34 = sor.u32 %s32, %s33
      %p35 = scmp.eq.s32.totalorder %s34, 0
      %s37 = sadd.s32 %s36, 1
      %s38 = scalar_select %p35, %s36, %s37
      %p41 = pneg %p35
      %p42 = scmp.eq.s32.totalorder %s12, 3
      %p43 = por %p41, %p42
      %p44 = scmp.ne.s32.totalorder %s36, %s39
      %p45 = scmp.eq.s32.totalorder %s12, 0
      %p46 = por %p44, %p45
      %p47 = scmp.ne.s32.totalorder %s36, %s39
      %p48 = scmp.eq.s32.totalorder %s17, 3
      %p49 = por %p47, %p48
      %p50 = scmp.ne.s32.totalorder %s39, %s40
      %p51 = scmp.eq.s32.totalorder %s17, 0
      %p52 = por %p50, %p51
      %p53 = scmp.ne.s32.totalorder %s39, %s40
      %p54 = scmp.eq.s32.totalorder %s18, 3
      %p55 = por %p53, %p54
      %p57 = scmp.ne.s32.totalorder %s40, %s56
      %p58 = scmp.eq.s32.totalorder %s18, 0
      %p59 = por %p57, %p58
      %s60 = ssub.s32 %s19, %s31
      %p61 = scmp.eq.s32.totalorder %s60, 0
      %s63 = sadd.s32 %s62, 1
      %s64 = scalar_select %p61, %s62, %s63
      %p67 = pneg %p61
      %p68 = scmp.eq.s32.totalorder %s12, 3
      %p69 = por %p67, %p68
      %p70 = scmp.ne.s32.totalorder %s62, %s65
      %p71 = scmp.eq.s32.totalorder %s12, 0
      %p72 = por %p70, %p71
      %p73 = scmp.ne.s32.totalorder %s62, %s65
      %p74 = scmp.eq.s32.totalorder %s17, 3
      %p75 = por %p73, %p74
      %p76 = scmp.ne.s32.totalorder %s65, %s66
      %p77 = scmp.eq.s32.totalorder %s17, 0
      %p78 = por %p76, %p77
      %p79 = scmp.ne.s32.totalorder %s65, %s66
      %p80 = scmp.eq.s32.totalorder %s18, 3
      %p81 = por %p79, %p80
      %p83 = scmp.ne.s32.totalorder %s66, %s82
      %p84 = scmp.eq.s32.totalorder %s18, 0
      %p85 = por %p83, %p84
      %s86 = ssub.s32 %s19, %s31
      %p87 = scmp.eq.s32.totalorder %s86, 0
      %s89 = sadd.s32 %s88, 1
      %s90 = scalar_select %p87, %s88, %s89
      %p93 = pneg %p87
      %p94 = scmp.eq.s32.totalorder %s12, 3
      %p95 = por %p93, %p94
      %p96 = scmp.ne.s32.totalorder %s88, %s91
      %p97 = scmp.eq.s32.totalorder %s12, 0
      %p98 = por %p96, %p97
      %p99 = scmp.ne.s32.totalorder %s88, %s91
      %p100 = scmp.eq.s32.totalorder %s17, 3
      %p101 = por %p99, %p100
      %p102 = scmp.ne.s32.totalorder %s91, %s92
      %p103 = scmp.eq.s32.totalorder %s17, 0
      %p104 = por %p102, %p103
      %p105 = scmp.ne.s32.totalorder %s91, %s92
      %p106 = scmp.eq.s32.totalorder %s18, 3
      %p107 = por %p105, %p106
      %p109 = scmp.ne.s32.totalorder %s92, %s108
      %p110 = scmp.eq.s32.totalorder %s18, 0
      %p111 = por %p109, %p110
      %s112 = ssub.s32 %s20, %s27
      %s113 = ssub.s32 %s19, %s31
      %s114 = sor.u32 %s112, %s113
      %p115 = scmp.eq.s32.totalorder %s114, 0
      %s117 = sadd.s32 %s116, 1
      %s118 = scalar_select %p115, %s116, %s117
      %p121 = pneg %p115
      %p122 = scmp.eq.s32.totalorder %s12, 3
      %p123 = por %p121, %p122
      %p124 = scmp.ne.s32.totalorder %s116, %s119
      %p125 = scmp.eq.s32.totalorder %s12, 0
      %p126 = por %p124, %p125
      %p127 = scmp.ne.s32.totalorder %s116, %s119
      %p128 = scmp.eq.s32.totalorder %s17, 3
      %p129 = por %p127, %p128
      %p130 = scmp.ne.s32.totalorder %s119, %s120
      %p131 = scmp.eq.s32.totalorder %s17, 0
      %p132 = por %p130, %p131
      %p133 = scmp.ne.s32.totalorder %s119, %s120
      %p134 = scmp.eq.s32.totalorder %s18, 3
      %p135 = por %p133, %p134
      %p137 = scmp.ne.s32.totalorder %s120, %s136
      %p138 = scmp.eq.s32.totalorder %s18, 0
      %p139 = por %p137, %p138
      %p140 = scmp.le.s32.totalorder 1, %s12
      %p141 = scmp.lt.s32.totalorder %s12, 5
      %p142 = pnand %p140, %p141
      %p143 = pneg %p142
      // Predicated region
      $region9: #{tpu_custom_call.1} parent=5 // pred_check
        _
      $region10: #{tpu_custom_call.1} parent=5 // pred_check_branch
        %145 = sbr.rel (%p142) target = $region12
      $region11: #{tpu_custom_call.1} parent=5 // pred_region
        %s146 = ssub.s32 %s12, 1
      $region12: #{tpu_custom_call.1} parent=5 // pred_fallthru
        _
      %p147 = scmp.lt.s32.totalorder %s12, 4
      // Predicated region
      $region13: #{tpu_custom_call.1} parent=5 // pred_check
        %p148 = pneg %p147
      $region14: #{tpu_custom_call.1} parent=5 // pred_check_branch
        %150 = sbr.rel (%p148) target = $region16
      $region15: #{tpu_custom_call.1} parent=5 // pred_region
        // Predicated region
        $region17: #{tpu_custom_call.1} parent=15 // pred_check
          %p151 = pneg %p46
        $region18: #{tpu_custom_call.1} parent=15 // pred_check_branch
          %153 = sbr.rel (%p151) target = $region20
        $region19: #{tpu_custom_call.1} parent=15 // pred_region
          %s154 = sand.u32 %s36, 1
          %s155 = sand.u32 %s36, 1
          %s156 = smul.addr %s155, 1024
          %s157 = scalar_lea.vmem [#allocation2], %s156
          %s158 = smul.u32 8, %s20
          %s159 = smul.u32 16, %s19
          %s160 = smul.addr %s158, 32
          %s161 = sadd.s32 %s159, %s160
          %s162 = smul.addr %s161, 8
          %s163 = scalar_lea.vmem %s0, %s162
          // Predicated region
          $region21: #{tpu_custom_call.1} parent=19 // pred_check
            _
          $region22: #{tpu_custom_call.1} parent=19 // pred_check_branch
            %165 = sbr.rel (0) target = $region24
          $region23: #{tpu_custom_call.1} parent=19 // pred_region
            // Predicated region
            $region25: #{tpu_custom_call.1} parent=23 // pred_check
              _
            $region26: #{tpu_custom_call.1} parent=23 // pred_check_branch
              %167 = sbr.rel (0) target = $region28
            $region27: #{tpu_custom_call.1} parent=23 // pred_region
              // Predicated region
              $region40: #{tpu_custom_call.1} parent=27 // pred_check
                _
              $region41: #{tpu_custom_call.1} parent=27 // pred_check_branch
                %436 = sbr.rel (0) target = $region43
              $region42: #{tpu_custom_call.1} parent=27 // pred_region
                loop: start=0, step=1, limit=1
                $region44: #{tpu_custom_call.1} parent=42 // loop_pre_header
                  _
                $region45: #{tpu_custom_call.1} parent=42 // loop_header
                  %s438 = sphi 0, %s442
                  %p439 = scmp.ge.s32.totalorder %s438, 1
                  %s443 = sphi %s163, %s163
                  %s444 = sphi %s157, %s157
                $region46: #{tpu_custom_call.1} parent=42 // loop_header_branch
                  %441 = sbr.rel (%p439) target = $region50
                $region47: #{tpu_custom_call.1} parent=42 // loop_body
                  %v445 = vld [vmem:[%s443] sm:$0xff]
                  %446 = vst [vmem:[%s444] sm:$0xff] %v445
                  %v447 = vld [vmem:[%s443 + $0x8] sm:$0xff]
                  %448 = vst [vmem:[%s444 + $0x8] sm:$0xff] %v447
                  %v449 = vld [vmem:[%s443 + $0x10] sm:$0xff]
                  %450 = vst [vmem:[%s444 + $0x10] sm:$0xff] %v449
                  %v451 = vld [vmem:[%s443 + $0x18] sm:$0xff]
                  %452 = vst [vmem:[%s444 + $0x18] sm:$0xff] %v451
                  %v453 = vld [vmem:[%s443 + $0x20] sm:$0xff]
                  %454 = vst [vmem:[%s444 + $0x20] sm:$0xff] %v453
                  %v455 = vld [vmem:[%s443 + $0x28] sm:$0xff]
                  %456 = vst [vmem:[%s444 + $0x28] sm:$0xff] %v455
                  %v457 = vld [vmem:[%s443 + $0x30] sm:$0xff]
                  %458 = vst [vmem:[%s444 + $0x30] sm:$0xff] %v457
                  %v459 = vld [vmem:[%s443 + $0x38] sm:$0xff]
                  %460 = vst [vmem:[%s444 + $0x38] sm:$0xff] %v459
                  %v461 = vld [vmem:[%s443 + $0x40] sm:$0xff]
                  %462 = vst [vmem:[%s444 + $0x40] sm:$0xff] %v461
                  %v463 = vld [vmem:[%s443 + $0x48] sm:$0xff]
                  %464 = vst [vmem:[%s444 + $0x48] sm:$0xff] %v463
                  %v465 = vld [vmem:[%s443 + $0x50] sm:$0xff]
                  %466 = vst [vmem:[%s444 + $0x50] sm:$0xff] %v465
                  %v467 = vld [vmem:[%s443 + $0x58] sm:$0xff]
                  %468 = vst [vmem:[%s444 + $0x58] sm:$0xff] %v467
                  %v469 = vld [vmem:[%s443 + $0x60] sm:$0xff]
                  %470 = vst [vmem:[%s444 + $0x60] sm:$0xff] %v469
                  %v471 = vld [vmem:[%s443 + $0x68] sm:$0xff]
                  %472 = vst [vmem:[%s444 + $0x68] sm:$0xff] %v471
                  %v473 = vld [vmem:[%s443 + $0x70] sm:$0xff]
                  %474 = vst [vmem:[%s444 + $0x70] sm:$0xff] %v473
                  %v475 = vld [vmem:[%s443 + $0x78] sm:$0xff]
                  %476 = vst [vmem:[%s444 + $0x78] sm:$0xff] %v475
                  %v477 = vld [vmem:[%s443 + $0x100] sm:$0xff]
                  %478 = vst [vmem:[%s444 + $0x80] sm:$0xff] %v477
                  %v479 = vld [vmem:[%s443 + $0x108] sm:$0xff]
                  %480 = vst [vmem:[%s444 + $0x88] sm:$0xff] %v479
                  %v481 = vld [vmem:[%s443 + $0x110] sm:$0xff]
                  %482 = vst [vmem:[%s444 + $0x90] sm:$0xff] %v481
                  %v483 = vld [vmem:[%s443 + $0x118] sm:$0xff]
                  %484 = vst [vmem:[%s444 + $0x98] sm:$0xff] %v483
                  %v485 = vld [vmem:[%s443 + $0x120] sm:$0xff]
                  %486 = vst [vmem:[%s444 + $0xa0] sm:$0xff] %v485
                  %v487 = vld [vmem:[%s443 + $0x128] sm:$0xff]
                  %488 = vst [vmem:[%s444 + $0xa8] sm:$0xff] %v487
                  %v489 = vld [vmem:[%s443 + $0x130] sm:$0xff]
                  %490 = vst [vmem:[%s444 + $0xb0] sm:$0xff] %v489
                  %v491 = vld [vmem:[%s443 + $0x138] sm:$0xff]
                  %492 = vst [vmem:[%s444 + $0xb8] sm:$0xff] %v491
                  %v493 = vld [vmem:[%s443 + $0x140] sm:$0xff]
                  %494 = vst [vmem:[%s444 + $0xc0] sm:$0xff] %v493
                  %v495 = vld [vmem:[%s443 + $0x148] sm:$0xff]
                  %496 = vst [vmem:[%s444 + $0xc8] sm:$0xff] %v495
                  %v497 = vld [vmem:[%s443 + $0x150] sm:$0xff]
                  %498 = vst [vmem:[%s444 + $0xd0] sm:$0xff] %v497
                  %v499 = vld [vmem:[%s443 + $0x158] sm:$0xff]
                  %500 = vst [vmem:[%s444 + $0xd8] sm:$0xff] %v499
                  %v501 = vld [vmem:[%s443 + $0x160] sm:$0xff]
                  %502 = vst [vmem:[%s444 + $0xe0] sm:$0xff] %v501
                  %v503 = vld [vmem:[%s443 + $0x168] sm:$0xff]
                  %504 = vst [vmem:[%s444 + $0xe8] sm:$0xff] %v503
                  %v505 = vld [vmem:[%s443 + $0x170] sm:$0xff]
                  %506 = vst [vmem:[%s444 + $0xf0] sm:$0xff] %v505
                  %v507 = vld [vmem:[%s443 + $0x178] sm:$0xff]
                  %508 = vst [vmem:[%s444 + $0xf8] sm:$0xff] %v507
                  %v509 = vld [vmem:[%s443 + $0x200] sm:$0xff]
                  %510 = vst [vmem:[%s444 + $0x100] sm:$0xff] %v509
                  %v511 = vld [vmem:[%s443 + $0x208] sm:$0xff]
                  %512 = vst [vmem:[%s444 + $0x108] sm:$0xff] %v511
                  %v513 = vld [vmem:[%s443 + $0x210] sm:$0xff]
                  %514 = vst [vmem:[%s444 + $0x110] sm:$0xff] %v513
                  %v515 = vld [vmem:[%s443 + $0x218] sm:$0xff]
                  %516 = vst [vmem:[%s444 + $0x118] sm:$0xff] %v515
                  %v517 = vld [vmem:[%s443 + $0x220] sm:$0xff]
                  %518 = vst [vmem:[%s444 + $0x120] sm:$0xff] %v517
                  %v519 = vld [vmem:[%s443 + $0x228] sm:$0xff]
                  %520 = vst [vmem:[%s444 + $0x128] sm:$0xff] %v519
                  %v521 = vld [vmem:[%s443 + $0x230] sm:$0xff]
                  %522 = vst [vmem:[%s444 + $0x130] sm:$0xff] %v521
                  %v523 = vld [vmem:[%s443 + $0x238] sm:$0xff]
                  %524 = vst [vmem:[%s444 + $0x138] sm:$0xff] %v523
                  %v525 = vld [vmem:[%s443 + $0x240] sm:$0xff]
                  %526 = vst [vmem:[%s444 + $0x140] sm:$0xff] %v525
                  %v527 = vld [vmem:[%s443 + $0x248] sm:$0xff]
                  %528 = vst [vmem:[%s444 + $0x148] sm:$0xff] %v527
                  %v529 = vld [vmem:[%s443 + $0x250] sm:$0xff]
                  %530 = vst [vmem:[%s444 + $0x150] sm:$0xff] %v529
                  %v531 = vld [vmem:[%s443 + $0x258] sm:$0xff]
                  %532 = vst [vmem:[%s444 + $0x158] sm:$0xff] %v531
                  %v533 = vld [vmem:[%s443 + $0x260] sm:$0xff]
                  %534 = vst [vmem:[%s444 + $0x160] sm:$0xff] %v533
                  %v535 = vld [vmem:[%s443 + $0x268] sm:$0xff]
                  %536 = vst [vmem:[%s444 + $0x168] sm:$0xff] %v535
                  %v537 = vld [vmem:[%s443 + $0x270] sm:$0xff]
                  %538 = vst [vmem:[%s444 + $0x170] sm:$0xff] %v537
                  %v539 = vld [vmem:[%s443 + $0x278] sm:$0xff]
                  %540 = vst [vmem:[%s444 + $0x178] sm:$0xff] %v539
                  %v541 = vld [vmem:[%s443 + $0x300] sm:$0xff]
                  %542 = vst [vmem:[%s444 + $0x180] sm:$0xff] %v541
                  %v543 = vld [vmem:[%s443 + $0x308] sm:$0xff]
                  %544 = vst [vmem:[%s444 + $0x188] sm:$0xff] %v543
                  %v545 = vld [vmem:[%s443 + $0x310] sm:$0xff]
                  %546 = vst [vmem:[%s444 + $0x190] sm:$0xff] %v545
                  %v547 = vld [vmem:[%s443 + $0x318] sm:$0xff]
                  %548 = vst [vmem:[%s444 + $0x198] sm:$0xff] %v547
                  %v549 = vld [vmem:[%s443 + $0x320] sm:$0xff]
                  %550 = vst [vmem:[%s444 + $0x1a0] sm:$0xff] %v549
                  %v551 = vld [vmem:[%s443 + $0x328] sm:$0xff]
                  %552 = vst [vmem:[%s444 + $0x1a8] sm:$0xff] %v551
                  %v553 = vld [vmem:[%s443 + $0x330] sm:$0xff]
                  %554 = vst [vmem:[%s444 + $0x1b0] sm:$0xff] %v553
                  %v555 = vld [vmem:[%s443 + $0x338] sm:$0xff]
                  %556 = vst [vmem:[%s444 + $0x1b8] sm:$0xff] %v555
                  %v557 = vld [vmem:[%s443 + $0x340] sm:$0xff]
                  %558 = vst [vmem:[%s444 + $0x1c0] sm:$0xff] %v557
                  %v559 = vld [vmem:[%s443 + $0x348] sm:$0xff]
                  %560 = vst [vmem:[%s444 + $0x1c8] sm:$0xff] %v559
                  %v561 = vld [vmem:[%s443 + $0x350] sm:$0xff]
                  %562 = vst [vmem:[%s444 + $0x1d0] sm:$0xff] %v561
                  %v563 = vld [vmem:[%s443 + $0x358] sm:$0xff]
                  %564 = vst [vmem:[%s444 + $0x1d8] sm:$0xff] %v563
                  %v565 = vld [vmem:[%s443 + $0x360] sm:$0xff]
                  %566 = vst [vmem:[%s444 + $0x1e0] sm:$0xff] %v565
                  %v567 = vld [vmem:[%s443 + $0x368] sm:$0xff]
                  %568 = vst [vmem:[%s444 + $0x1e8] sm:$0xff] %v567
                  %v569 = vld [vmem:[%s443 + $0x370] sm:$0xff]
                  %570 = vst [vmem:[%s444 + $0x1f0] sm:$0xff] %v569
                  %v571 = vld [vmem:[%s443 + $0x378] sm:$0xff]
                  %572 = vst [vmem:[%s444 + $0x1f8] sm:$0xff] %v571
                  %v573 = vld [vmem:[%s443 + $0x400] sm:$0xff]
                  %574 = vst [vmem:[%s444 + $0x200] sm:$0xff] %v573
                  %v575 = vld [vmem:[%s443 + $0x408] sm:$0xff]
                  %576 = vst [vmem:[%s444 + $0x208] sm:$0xff] %v575
                  %v577 = vld [vmem:[%s443 + $0x410] sm:$0xff]
                  %578 = vst [vmem:[%s444 + $0x210] sm:$0xff] %v577
                  %v579 = vld [vmem:[%s443 + $0x418] sm:$0xff]
                  %580 = vst [vmem:[%s444 + $0x218] sm:$0xff] %v579
                  %v581 = vld [vmem:[%s443 + $0x420] sm:$0xff]
                  %582 = vst [vmem:[%s444 + $0x220] sm:$0xff] %v581
                  %v583 = vld [vmem:[%s443 + $0x428] sm:$0xff]
                  %584 = vst [vmem:[%s444 + $0x228] sm:$0xff] %v583
                  %v585 = vld [vmem:[%s443 + $0x430] sm:$0xff]
                  %586 = vst [vmem:[%s444 + $0x230] sm:$0xff] %v585
                  %v587 = vld [vmem:[%s443 + $0x438] sm:$0xff]
                  %588 = vst [vmem:[%s444 + $0x238] sm:$0xff] %v587
                  %v589 = vld [vmem:[%s443 + $0x440] sm:$0xff]
                  %590 = vst [vmem:[%s444 + $0x240] sm:$0xff] %v589
                  %v591 = vld [vmem:[%s443 + $0x448] sm:$0xff]
                  %592 = vst [vmem:[%s444 + $0x248] sm:$0xff] %v591
                  %v593 = vld [vmem:[%s443 + $0x450] sm:$0xff]
                  %594 = vst [vmem:[%s444 + $0x250] sm:$0xff] %v593
                  %v595 = vld [vmem:[%s443 + $0x458] sm:$0xff]
                  %596 = vst [vmem:[%s444 + $0x258] sm:$0xff] %v595
                  %v597 = vld [vmem:[%s443 + $0x460] sm:$0xff]
                  %598 = vst [vmem:[%s444 + $0x260] sm:$0xff] %v597
                  %v599 = vld [vmem:[%s443 + $0x468] sm:$0xff]
                  %600 = vst [vmem:[%s444 + $0x268] sm:$0xff] %v599
                  %v601 = vld [vmem:[%s443 + $0x470] sm:$0xff]
                  %602 = vst [vmem:[%s444 + $0x270] sm:$0xff] %v601
                  %v603 = vld [vmem:[%s443 + $0x478] sm:$0xff]
                  %604 = vst [vmem:[%s444 + $0x278] sm:$0xff] %v603
                  %v605 = vld [vmem:[%s443 + $0x500] sm:$0xff]
                  %606 = vst [vmem:[%s444 + $0x280] sm:$0xff] %v605
                  %v607 = vld [vmem:[%s443 + $0x508] sm:$0xff]
                  %608 = vst [vmem:[%s444 + $0x288] sm:$0xff] %v607
                  %v609 = vld [vmem:[%s443 + $0x510] sm:$0xff]
                  %610 = vst [vmem:[%s444 + $0x290] sm:$0xff] %v609
                  %v611 = vld [vmem:[%s443 + $0x518] sm:$0xff]
                  %612 = vst [vmem:[%s444 + $0x298] sm:$0xff] %v611
                  %v613 = vld [vmem:[%s443 + $0x520] sm:$0xff]
                  %614 = vst [vmem:[%s444 + $0x2a0] sm:$0xff] %v613
                  %v615 = vld [vmem:[%s443 + $0x528] sm:$0xff]
                  %616 = vst [vmem:[%s444 + $0x2a8] sm:$0xff] %v615
                  %v617 = vld [vmem:[%s443 + $0x530] sm:$0xff]
                  %618 = vst [vmem:[%s444 + $0x2b0] sm:$0xff] %v617
                  %v619 = vld [vmem:[%s443 + $0x538] sm:$0xff]
                  %620 = vst [vmem:[%s444 + $0x2b8] sm:$0xff] %v619
                  %v621 = vld [vmem:[%s443 + $0x540] sm:$0xff]
                  %622 = vst [vmem:[%s444 + $0x2c0] sm:$0xff] %v621
                  %v623 = vld [vmem:[%s443 + $0x548] sm:$0xff]
                  %624 = vst [vmem:[%s444 + $0x2c8] sm:$0xff] %v623
                  %v625 = vld [vmem:[%s443 + $0x550] sm:$0xff]
                  %626 = vst [vmem:[%s444 + $0x2d0] sm:$0xff] %v625
                  %v627 = vld [vmem:[%s443 + $0x558] sm:$0xff]
                  %628 = vst [vmem:[%s444 + $0x2d8] sm:$0xff] %v627
                  %v629 = vld [vmem:[%s443 + $0x560] sm:$0xff]
                  %630 = vst [vmem:[%s444 + $0x2e0] sm:$0xff] %v629
                  %v631 = vld [vmem:[%s443 + $0x568] sm:$0xff]
                  %632 = vst [vmem:[%s444 + $0x2e8] sm:$0xff] %v631
                  %v633 = vld [vmem:[%s443 + $0x570] sm:$0xff]
                  %634 = vst [vmem:[%s444 + $0x2f0] sm:$0xff] %v633
                  %v635 = vld [vmem:[%s443 + $0x578] sm:$0xff]
                  %636 = vst [vmem:[%s444 + $0x2f8] sm:$0xff] %v635
                  %v637 = vld [vmem:[%s443 + $0x600] sm:$0xff]
                  %638 = vst [vmem:[%s444 + $0x300] sm:$0xff] %v637
                  %v639 = vld [vmem:[%s443 + $0x608] sm:$0xff]
                  %640 = vst [vmem:[%s444 + $0x308] sm:$0xff] %v639
                  %v641 = vld [vmem:[%s443 + $0x610] sm:$0xff]
                  %642 = vst [vmem:[%s444 + $0x310] sm:$0xff] %v641
                  %v643 = vld [vmem:[%s443 + $0x618] sm:$0xff]
                  %644 = vst [vmem:[%s444 + $0x318] sm:$0xff] %v643
                  %v645 = vld [vmem:[%s443 + $0x620] sm:$0xff]
                  %646 = vst [vmem:[%s444 + $0x320] sm:$0xff] %v645
                  %v647 = vld [vmem:[%s443 + $0x628] sm:$0xff]
                  %648 = vst [vmem:[%s444 + $0x328] sm:$0xff] %v647
                  %v649 = vld [vmem:[%s443 + $0x630] sm:$0xff]
                  %650 = vst [vmem:[%s444 + $0x330] sm:$0xff] %v649
                  %v651 = vld [vmem:[%s443 + $0x638] sm:$0xff]
                  %652 = vst [vmem:[%s444 + $0x338] sm:$0xff] %v651
                  %v653 = vld [vmem:[%s443 + $0x640] sm:$0xff]
                  %654 = vst [vmem:[%s444 + $0x340] sm:$0xff] %v653
                  %v655 = vld [vmem:[%s443 + $0x648] sm:$0xff]
                  %656 = vst [vmem:[%s444 + $0x348] sm:$0xff] %v655
                  %v657 = vld [vmem:[%s443 + $0x650] sm:$0xff]
                  %658 = vst [vmem:[%s444 + $0x350] sm:$0xff] %v657
                  %v659 = vld [vmem:[%s443 + $0x658] sm:$0xff]
                  %660 = vst [vmem:[%s444 + $0x358] sm:$0xff] %v659
                  %v661 = vld [vmem:[%s443 + $0x660] sm:$0xff]
                  %662 = vst [vmem:[%s444 + $0x360] sm:$0xff] %v661
                  %v663 = vld [vmem:[%s443 + $0x668] sm:$0xff]
                  %664 = vst [vmem:[%s444 + $0x368] sm:$0xff] %v663
                  %v665 = vld [vmem:[%s443 + $0x670] sm:$0xff]
                  %666 = vst [vmem:[%s444 + $0x370] sm:$0xff] %v665
                  %v667 = vld [vmem:[%s443 + $0x678] sm:$0xff]
                  %668 = vst [vmem:[%s444 + $0x378] sm:$0xff] %v667
                  %v669 = vld [vmem:[%s443 + $0x700] sm:$0xff]
                  %670 = vst [vmem:[%s444 + $0x380] sm:$0xff] %v669
                  %v671 = vld [vmem:[%s443 + $0x708] sm:$0xff]
                  %672 = vst [vmem:[%s444 + $0x388] sm:$0xff] %v671
                  %v673 = vld [vmem:[%s443 + $0x710] sm:$0xff]
                  %674 = vst [vmem:[%s444 + $0x390] sm:$0xff] %v673
                  %v675 = vld [vmem:[%s443 + $0x718] sm:$0xff]
                  %676 = vst [vmem:[%s444 + $0x398] sm:$0xff] %v675
                  %v677 = vld [vmem:[%s443 + $0x720] sm:$0xff]
                  %678 = vst [vmem:[%s444 + $0x3a0] sm:$0xff] %v677
                  %v679 = vld [vmem:[%s443 + $0x728] sm:$0xff]
                  %680 = vst [vmem:[%s444 + $0x3a8] sm:$0xff] %v679
                  %v681 = vld [vmem:[%s443 + $0x730] sm:$0xff]
                  %682 = vst [vmem:[%s444 + $0x3b0] sm:$0xff] %v681
                  %v683 = vld [vmem:[%s443 + $0x738] sm:$0xff]
                  %684 = vst [vmem:[%s444 + $0x3b8] sm:$0xff] %v683
                  %v685 = vld [vmem:[%s443 + $0x740] sm:$0xff]
                  %686 = vst [vmem:[%s444 + $0x3c0] sm:$0xff] %v685
                  %v687 = vld [vmem:[%s443 + $0x748] sm:$0xff]
                  %688 = vst [vmem:[%s444 + $0x3c8] sm:$0xff] %v687
                  %v689 = vld [vmem:[%s443 + $0x750] sm:$0xff]
                  %690 = vst [vmem:[%s444 + $0x3d0] sm:$0xff] %v689
                  %v691 = vld [vmem:[%s443 + $0x758] sm:$0xff]
                  %692 = vst [vmem:[%s444 + $0x3d8] sm:$0xff] %v691
                  %v693 = vld [vmem:[%s443 + $0x760] sm:$0xff]
                  %694 = vst [vmem:[%s444 + $0x3e0] sm:$0xff] %v693
                  %v695 = vld [vmem:[%s443 + $0x768] sm:$0xff]
                  %696 = vst [vmem:[%s444 + $0x3e8] sm:$0xff] %v695
                  %v697 = vld [vmem:[%s443 + $0x770] sm:$0xff]
                  %698 = vst [vmem:[%s444 + $0x3f0] sm:$0xff] %v697
                  %v699 = vld [vmem:[%s443 + $0x778] sm:$0xff]
                  %700 = vst [vmem:[%s444 + $0x3f8] sm:$0xff] %v699
                $region48: #{tpu_custom_call.1} parent=42 // loop_footer
                  %s442 = sadd.s32 1, %s438
                $region49: #{tpu_custom_call.1} parent=42 // loop_footer_branch
                  %437 = sbr.rel target = $region45
                $region50: #{tpu_custom_call.1} parent=42 // loop_exit
                  _
              $region43: #{tpu_custom_call.1} parent=27 // pred_fallthru
                _
              // Predicated region
              $region51: #{tpu_custom_call.1} parent=27 // pred_check
                _
              $region52: #{tpu_custom_call.1} parent=27 // pred_check_branch
                %702 = sbr.rel target = $region54
              $region53: #{tpu_custom_call.1} parent=27 // pred_region
                _
              $region54: #{tpu_custom_call.1} parent=27 // pred_fallthru
                _
            $region28: #{tpu_custom_call.1} parent=23 // pred_fallthru
              _
            // Predicated region
            $region29: #{tpu_custom_call.1} parent=23 // pred_check
              _
            $region30: #{tpu_custom_call.1} parent=23 // pred_check_branch
              %169 = sbr.rel target = $region32
            $region31: #{tpu_custom_call.1} parent=23 // pred_region
              loop: start=0, step=1, limit=1
              $region33: #{tpu_custom_call.1} parent=31 // loop_pre_header
                _
              $region34: #{tpu_custom_call.1} parent=31 // loop_header
                %s172 = sphi 0, %s176
                %p173 = scmp.ge.s32.totalorder %s172, 1
                %s177 = sphi %s163, %s163
                %s178 = sphi %s157, %s157
              $region35: #{tpu_custom_call.1} parent=31 // loop_header_branch
                %175 = sbr.rel (%p173) target = $region39
              $region36: #{tpu_custom_call.1} parent=31 // loop_body
                %v179 = vld [vmem:[%s177] sm:$0xff]
                %180 = vst [vmem:[%s178] sm:$0xff] %v179
                %v181 = vld [vmem:[%s177 + $0x8] sm:$0xff]
                %182 = vst [vmem:[%s178 + $0x8] sm:$0xff] %v181
                %v183 = vld [vmem:[%s177 + $0x10] sm:$0xff]
                %184 = vst [vmem:[%s178 + $0x10] sm:$0xff] %v183
                %v185 = vld [vmem:[%s177 + $0x18] sm:$0xff]
                %186 = vst [vmem:[%s178 + $0x18] sm:$0xff] %v185
                %v187 = vld [vmem:[%s177 + $0x20] sm:$0xff]
                %188 = vst [vmem:[%s178 + $0x20] sm:$0xff] %v187
                %v189 = vld [vmem:[%s177 + $0x28] sm:$0xff]
                %190 = vst [vmem:[%s178 + $0x28] sm:$0xff] %v189
                %v191 = vld [vmem:[%s177 + $0x30] sm:$0xff]
                %192 = vst [vmem:[%s178 + $0x30] sm:$0xff] %v191
                %v193 = vld [vmem:[%s177 + $0x38] sm:$0xff]
                %194 = vst [vmem:[%s178 + $0x38] sm:$0xff] %v193
                %v195 = vld [vmem:[%s177 + $0x40] sm:$0xff]
                %196 = vst [vmem:[%s178 + $0x40] sm:$0xff] %v195
                %v197 = vld [vmem:[%s177 + $0x48] sm:$0xff]
                %198 = vst [vmem:[%s178 + $0x48] sm:$0xff] %v197
                %v199 = vld [vmem:[%s177 + $0x50] sm:$0xff]
                %200 = vst [vmem:[%s178 + $0x50] sm:$0xff] %v199
                %v201 = vld [vmem:[%s177 + $0x58] sm:$0xff]
                %202 = vst [vmem:[%s178 + $0x58] sm:$0xff] %v201
                %v203 = vld [vmem:[%s177 + $0x60] sm:$0xff]
                %204 = vst [vmem:[%s178 + $0x60] sm:$0xff] %v203
                %v205 = vld [vmem:[%s177 + $0x68] sm:$0xff]
                %206 = vst [vmem:[%s178 + $0x68] sm:$0xff] %v205
                %v207 = vld [vmem:[%s177 + $0x70] sm:$0xff]
                %208 = vst [vmem:[%s178 + $0x70] sm:$0xff] %v207
                %v209 = vld [vmem:[%s177 + $0x78] sm:$0xff]
                %210 = vst [vmem:[%s178 + $0x78] sm:$0xff] %v209
                %v211 = vld [vmem:[%s177 + $0x100] sm:$0xff]
                %212 = vst [vmem:[%s178 + $0x80] sm:$0xff] %v211
                %v213 = vld [vmem:[%s177 + $0x108] sm:$0xff]
                %214 = vst [vmem:[%s178 + $0x88] sm:$0xff] %v213
                %v215 = vld [vmem:[%s177 + $0x110] sm:$0xff]
                %216 = vst [vmem:[%s178 + $0x90] sm:$0xff] %v215
                %v217 = vld [vmem:[%s177 + $0x118] sm:$0xff]
                %218 = vst [vmem:[%s178 + $0x98] sm:$0xff] %v217
                %v219 = vld [vmem:[%s177 + $0x120] sm:$0xff]
                %220 = vst [vmem:[%s178 + $0xa0] sm:$0xff] %v219
                %v221 = vld [vmem:[%s177 + $0x128] sm:$0xff]
                %222 = vst [vmem:[%s178 + $0xa8] sm:$0xff] %v221
                %v223 = vld [vmem:[%s177 + $0x130] sm:$0xff]
                %224 = vst [vmem:[%s178 + $0xb0] sm:$0xff] %v223
                %v225 = vld [vmem:[%s177 + $0x138] sm:$0xff]
                %226 = vst [vmem:[%s178 + $0xb8] sm:$0xff] %v225
                %v227 = vld [vmem:[%s177 + $0x140] sm:$0xff]
                %228 = vst [vmem:[%s178 + $0xc0] sm:$0xff] %v227
                %v229 = vld [vmem:[%s177 + $0x148] sm:$0xff]
                %230 = vst [vmem:[%s178 + $0xc8] sm:$0xff] %v229
                %v231 = vld [vmem:[%s177 + $0x150] sm:$0xff]
                %232 = vst [vmem:[%s178 + $0xd0] sm:$0xff] %v231
                %v233 = vld [vmem:[%s177 + $0x158] sm:$0xff]
                %234 = vst [vmem:[%s178 + $0xd8] sm:$0xff] %v233
                %v235 = vld [vmem:[%s177 + $0x160] sm:$0xff]
                %236 = vst [vmem:[%s178 + $0xe0] sm:$0xff] %v235
                %v237 = vld [vmem:[%s177 + $0x168] sm:$0xff]
                %238 = vst [vmem:[%s178 + $0xe8] sm:$0xff] %v237
                %v239 = vld [vmem:[%s177 + $0x170] sm:$0xff]
                %240 = vst [vmem:[%s178 + $0xf0] sm:$0xff] %v239
                %v241 = vld [vmem:[%s177 + $0x178] sm:$0xff]
                %242 = vst [vmem:[%s178 + $0xf8] sm:$0xff] %v241
                %v243 = vld [vmem:[%s177 + $0x200] sm:$0xff]
                %244 = vst [vmem:[%s178 + $0x100] sm:$0xff] %v243
                %v245 = vld [vmem:[%s177 + $0x208] sm:$0xff]
                %246 = vst [vmem:[%s178 + $0x108] sm:$0xff] %v245
                %v247 = vld [vmem:[%s177 + $0x210] sm:$0xff]
                %248 = vst [vmem:[%s178 + $0x110] sm:$0xff] %v247
                %v249 = vld [vmem:[%s177 + $0x218] sm:$0xff]
                %250 = vst [vmem:[%s178 + $0x118] sm:$0xff] %v249
                %v251 = vld [vmem:[%s177 + $0x220] sm:$0xff]
                %252 = vst [vmem:[%s178 + $0x120] sm:$0xff] %v251
                %v253 = vld [vmem:[%s177 + $0x228] sm:$0xff]
                %254 = vst [vmem:[%s178 + $0x128] sm:$0xff] %v253
                %v255 = vld [vmem:[%s177 + $0x230] sm:$0xff]
                %256 = vst [vmem:[%s178 + $0x130] sm:$0xff] %v255
                %v257 = vld [vmem:[%s177 + $0x238] sm:$0xff]
                %258 = vst [vmem:[%s178 + $0x138] sm:$0xff] %v257
                %v259 = vld [vmem:[%s177 + $0x240] sm:$0xff]
                %260 = vst [vmem:[%s178 + $0x140] sm:$0xff] %v259
                %v261 = vld [vmem:[%s177 + $0x248] sm:$0xff]
                %262 = vst [vmem:[%s178 + $0x148] sm:$0xff] %v261
                %v263 = vld [vmem:[%s177 + $0x250] sm:$0xff]
                %264 = vst [vmem:[%s178 + $0x150] sm:$0xff] %v263
                %v265 = vld [vmem:[%s177 + $0x258] sm:$0xff]
                %266 = vst [vmem:[%s178 + $0x158] sm:$0xff] %v265
                %v267 = vld [vmem:[%s177 + $0x260] sm:$0xff]
                %268 = vst [vmem:[%s178 + $0x160] sm:$0xff] %v267
                %v269 = vld [vmem:[%s177 + $0x268] sm:$0xff]
                %270 = vst [vmem:[%s178 + $0x168] sm:$0xff] %v269
                %v271 = vld [vmem:[%s177 + $0x270] sm:$0xff]
                %272 = vst [vmem:[%s178 + $0x170] sm:$0xff] %v271
                %v273 = vld [vmem:[%s177 + $0x278] sm:$0xff]
                %274 = vst [vmem:[%s178 + $0x178] sm:$0xff] %v273
                %v275 = vld [vmem:[%s177 + $0x300] sm:$0xff]
                %276 = vst [vmem:[%s178 + $0x180] sm:$0xff] %v275
                %v277 = vld [vmem:[%s177 + $0x308] sm:$0xff]
                %278 = vst [vmem:[%s178 + $0x188] sm:$0xff] %v277
                %v279 = vld [vmem:[%s177 + $0x310] sm:$0xff]
                %280 = vst [vmem:[%s178 + $0x190] sm:$0xff] %v279
                %v281 = vld [vmem:[%s177 + $0x318] sm:$0xff]
                %282 = vst [vmem:[%s178 + $0x198] sm:$0xff] %v281
                %v283 = vld [vmem:[%s177 + $0x320] sm:$0xff]
                %284 = vst [vmem:[%s178 + $0x1a0] sm:$0xff] %v283
                %v285 = vld [vmem:[%s177 + $0x328] sm:$0xff]
                %286 = vst [vmem:[%s178 + $0x1a8] sm:$0xff] %v285
                %v287 = vld [vmem:[%s177 + $0x330] sm:$0xff]
                %288 = vst [vmem:[%s178 + $0x1b0] sm:$0xff] %v287
                %v289 = vld [vmem:[%s177 + $0x338] sm:$0xff]
                %290 = vst [vmem:[%s178 + $0x1b8] sm:$0xff] %v289
                %v291 = vld [vmem:[%s177 + $0x340] sm:$0xff]
                %292 = vst [vmem:[%s178 + $0x1c0] sm:$0xff] %v291
                %v293 = vld [vmem:[%s177 + $0x348] sm:$0xff]
                %294 = vst [vmem:[%s178 + $0x1c8] sm:$0xff] %v293
                %v295 = vld [vmem:[%s177 + $0x350] sm:$0xff]
                %296 = vst [vmem:[%s178 + $0x1d0] sm:$0xff] %v295
                %v297 = vld [vmem:[%s177 + $0x358] sm:$0xff]
                %298 = vst [vmem:[%s178 + $0x1d8] sm:$0xff] %v297
                %v299 = vld [vmem:[%s177 + $0x360] sm:$0xff]
                %300 = vst [vmem:[%s178 + $0x1e0] sm:$0xff] %v299
                %v301 = vld [vmem:[%s177 + $0x368] sm:$0xff]
                %302 = vst [vmem:[%s178 + $0x1e8] sm:$0xff] %v301
                %v303 = vld [vmem:[%s177 + $0x370] sm:$0xff]
                %304 = vst [vmem:[%s178 + $0x1f0] sm:$0xff] %v303
                %v305 = vld [vmem:[%s177 + $0x378] sm:$0xff]
                %306 = vst [vmem:[%s178 + $0x1f8] sm:$0xff] %v305
                %v307 = vld [vmem:[%s177 + $0x400] sm:$0xff]
                %308 = vst [vmem:[%s178 + $0x200] sm:$0xff] %v307
                %v309 = vld [vmem:[%s177 + $0x408] sm:$0xff]
                %310 = vst [vmem:[%s178 + $0x208] sm:$0xff] %v309
                %v311 = vld [vmem:[%s177 + $0x410] sm:$0xff]
                %312 = vst [vmem:[%s178 + $0x210] sm:$0xff] %v311
                %v313 = vld [vmem:[%s177 + $0x418] sm:$0xff]
                %314 = vst [vmem:[%s178 + $0x218] sm:$0xff] %v313
                %v315 = vld [vmem:[%s177 + $0x420] sm:$0xff]
                %316 = vst [vmem:[%s178 + $0x220] sm:$0xff] %v315
                %v317 = vld [vmem:[%s177 + $0x428] sm:$0xff]
                %318 = vst [vmem:[%s178 + $0x228] sm:$0xff] %v317
                %v319 = vld [vmem:[%s177 + $0x430] sm:$0xff]
                %320 = vst [vmem:[%s178 + $0x230] sm:$0xff] %v319
                %v321 = vld [vmem:[%s177 + $0x438] sm:$0xff]
                %322 = vst [vmem:[%s178 + $0x238] sm:$0xff] %v321
                %v323 = vld [vmem:[%s177 + $0x440] sm:$0xff]
                %324 = vst [vmem:[%s178 + $0x240] sm:$0xff] %v323
                %v325 = vld [vmem:[%s177 + $0x448] sm:$0xff]
                %326 = vst [vmem:[%s178 + $0x248] sm:$0xff] %v325
                %v327 = vld [vmem:[%s177 + $0x450] sm:$0xff]
                %328 = vst [vmem:[%s178 + $0x250] sm:$0xff] %v327
                %v329 = vld [vmem:[%s177 + $0x458] sm:$0xff]
                %330 = vst [vmem:[%s178 + $0x258] sm:$0xff] %v329
                %v331 = vld [vmem:[%s177 + $0x460] sm:$0xff]
                %332 = vst [vmem:[%s178 + $0x260] sm:$0xff] %v331
                %v333 = vld [vmem:[%s177 + $0x468] sm:$0xff]
                %334 = vst [vmem:[%s178 + $0x268] sm:$0xff] %v333
                %v335 = vld [vmem:[%s177 + $0x470] sm:$0xff]
                %336 = vst [vmem:[%s178 + $0x270] sm:$0xff] %v335
                %v337 = vld [vmem:[%s177 + $0x478] sm:$0xff]
                %338 = vst [vmem:[%s178 + $0x278] sm:$0xff] %v337
                %v339 = vld [vmem:[%s177 + $0x500] sm:$0xff]
                %340 = vst [vmem:[%s178 + $0x280] sm:$0xff] %v339
                %v341 = vld [vmem:[%s177 + $0x508] sm:$0xff]
                %342 = vst [vmem:[%s178 + $0x288] sm:$0xff] %v341
                %v343 = vld [vmem:[%s177 + $0x510] sm:$0xff]
                %344 = vst [vmem:[%s178 + $0x290] sm:$0xff] %v343
                %v345 = vld [vmem:[%s177 + $0x518] sm:$0xff]
                %346 = vst [vmem:[%s178 + $0x298] sm:$0xff] %v345
                %v347 = vld [vmem:[%s177 + $0x520] sm:$0xff]
                %348 = vst [vmem:[%s178 + $0x2a0] sm:$0xff] %v347
                %v349 = vld [vmem:[%s177 + $0x528] sm:$0xff]
                %350 = vst [vmem:[%s178 + $0x2a8] sm:$0xff] %v349
                %v351 = vld [vmem:[%s177 + $0x530] sm:$0xff]
                %352 = vst [vmem:[%s178 + $0x2b0] sm:$0xff] %v351
                %v353 = vld [vmem:[%s177 + $0x538] sm:$0xff]
                %354 = vst [vmem:[%s178 + $0x2b8] sm:$0xff] %v353
                %v355 = vld [vmem:[%s177 + $0x540] sm:$0xff]
                %356 = vst [vmem:[%s178 + $0x2c0] sm:$0xff] %v355
                %v357 = vld [vmem:[%s177 + $0x548] sm:$0xff]
                %358 = vst [vmem:[%s178 + $0x2c8] sm:$0xff] %v357
                %v359 = vld [vmem:[%s177 + $0x550] sm:$0xff]
                %360 = vst [vmem:[%s178 + $0x2d0] sm:$0xff] %v359
                %v361 = vld [vmem:[%s177 + $0x558] sm:$0xff]
                %362 = vst [vmem:[%s178 + $0x2d8] sm:$0xff] %v361
                %v363 = vld [vmem:[%s177 + $0x560] sm:$0xff]
                %364 = vst [vmem:[%s178 + $0x2e0] sm:$0xff] %v363
                %v365 = vld [vmem:[%s177 + $0x568] sm:$0xff]
                %366 = vst [vmem:[%s178 + $0x2e8] sm:$0xff] %v365
                %v367 = vld [vmem:[%s177 + $0x570] sm:$0xff]
                %368 = vst [vmem:[%s178 + $0x2f0] sm:$0xff] %v367
                %v369 = vld [vmem:[%s177 + $0x578] sm:$0xff]
                %370 = vst [vmem:[%s178 + $0x2f8] sm:$0xff] %v369
                %v371 = vld [vmem:[%s177 + $0x600] sm:$0xff]
                %372 = vst [vmem:[%s178 + $0x300] sm:$0xff] %v371
                %v373 = vld [vmem:[%s177 + $0x608] sm:$0xff]
                %374 = vst [vmem:[%s178 + $0x308] sm:$0xff] %v373
                %v375 = vld [vmem:[%s177 + $0x610] sm:$0xff]
                %376 = vst [vmem:[%s178 + $0x310] sm:$0xff] %v375
                %v377 = vld [vmem:[%s177 + $0x618] sm:$0xff]
                %378 = vst [vmem:[%s178 + $0x318] sm:$0xff] %v377
                %v379 = vld [vmem:[%s177 + $0x620] sm:$0xff]
                %380 = vst [vmem:[%s178 + $0x320] sm:$0xff] %v379
                %v381 = vld [vmem:[%s177 + $0x628] sm:$0xff]
                %382 = vst [vmem:[%s178 + $0x328] sm:$0xff] %v381
                %v383 = vld [vmem:[%s177 + $0x630] sm:$0xff]
                %384 = vst [vmem:[%s178 + $0x330] sm:$0xff] %v383
                %v385 = vld [vmem:[%s177 + $0x638] sm:$0xff]
                %386 = vst [vmem:[%s178 + $0x338] sm:$0xff] %v385
                %v387 = vld [vmem:[%s177 + $0x640] sm:$0xff]
                %388 = vst [vmem:[%s178 + $0x340] sm:$0xff] %v387
                %v389 = vld [vmem:[%s177 + $0x648] sm:$0xff]
                %390 = vst [vmem:[%s178 + $0x348] sm:$0xff] %v389
                %v391 = vld [vmem:[%s177 + $0x650] sm:$0xff]
                %392 = vst [vmem:[%s178 + $0x350] sm:$0xff] %v391
                %v393 = vld [vmem:[%s177 + $0x658] sm:$0xff]
                %394 = vst [vmem:[%s178 + $0x358] sm:$0xff] %v393
                %v395 = vld [vmem:[%s177 + $0x660] sm:$0xff]
                %396 = vst [vmem:[%s178 + $0x360] sm:$0xff] %v395
                %v397 = vld [vmem:[%s177 + $0x668] sm:$0xff]
                %398 = vst [vmem:[%s178 + $0x368] sm:$0xff] %v397
                %v399 = vld [vmem:[%s177 + $0x670] sm:$0xff]
                %400 = vst [vmem:[%s178 + $0x370] sm:$0xff] %v399
                %v401 = vld [vmem:[%s177 + $0x678] sm:$0xff]
                %402 = vst [vmem:[%s178 + $0x378] sm:$0xff] %v401
                %v403 = vld [vmem:[%s177 + $0x700] sm:$0xff]
                %404 = vst [vmem:[%s178 + $0x380] sm:$0xff] %v403
                %v405 = vld [vmem:[%s177 + $0x708] sm:$0xff]
                %406 = vst [vmem:[%s178 + $0x388] sm:$0xff] %v405
                %v407 = vld [vmem:[%s177 + $0x710] sm:$0xff]
                %408 = vst [vmem:[%s178 + $0x390] sm:$0xff] %v407
                %v409 = vld [vmem:[%s177 + $0x718] sm:$0xff]
                %410 = vst [vmem:[%s178 + $0x398] sm:$0xff] %v409
                %v411 = vld [vmem:[%s177 + $0x720] sm:$0xff]
                %412 = vst [vmem:[%s178 + $0x3a0] sm:$0xff] %v411
                %v413 = vld [vmem:[%s177 + $0x728] sm:$0xff]
                %414 = vst [vmem:[%s178 + $0x3a8] sm:$0xff] %v413
                %v415 = vld [vmem:[%s177 + $0x730] sm:$0xff]
                %416 = vst [vmem:[%s178 + $0x3b0] sm:$0xff] %v415
                %v417 = vld [vmem:[%s177 + $0x738] sm:$0xff]
                %418 = vst [vmem:[%s178 + $0x3b8] sm:$0xff] %v417
                %v419 = vld [vmem:[%s177 + $0x740] sm:$0xff]
                %420 = vst [vmem:[%s178 + $0x3c0] sm:$0xff] %v419
                %v421 = vld [vmem:[%s177 + $0x748] sm:$0xff]
                %422 = vst [vmem:[%s178 + $0x3c8] sm:$0xff] %v421
                %v423 = vld [vmem:[%s177 + $0x750] sm:$0xff]
                %424 = vst [vmem:[%s178 + $0x3d0] sm:$0xff] %v423
                %v425 = vld [vmem:[%s177 + $0x758] sm:$0xff]
                %426 = vst [vmem:[%s178 + $0x3d8] sm:$0xff] %v425
                %v427 = vld [vmem:[%s177 + $0x760] sm:$0xff]
                %428 = vst [vmem:[%s178 + $0x3e0] sm:$0xff] %v427
                %v429 = vld [vmem:[%s177 + $0x768] sm:$0xff]
                %430 = vst [vmem:[%s178 + $0x3e8] sm:$0xff] %v429
                %v431 = vld [vmem:[%s177 + $0x770] sm:$0xff]
                %432 = vst [vmem:[%s178 + $0x3f0] sm:$0xff] %v431
                %v433 = vld [vmem:[%s177 + $0x778] sm:$0xff]
                %434 = vst [vmem:[%s178 + $0x3f8] sm:$0xff] %v433
              $region37: #{tpu_custom_call.1} parent=31 // loop_footer
                %s176 = sadd.s32 1, %s172
              $region38: #{tpu_custom_call.1} parent=31 // loop_footer_branch
                %171 = sbr.rel target = $region34
              $region39: #{tpu_custom_call.1} parent=31 // loop_exit
                _
            $region32: #{tpu_custom_call.1} parent=23 // pred_fallthru
              _
          $region24: #{tpu_custom_call.1} parent=19 // pred_fallthru
            _
          %703 = vnop
        $region20: #{tpu_custom_call.1} parent=15 // pred_fallthru
          _
        // Predicated region
        $region55: #{tpu_custom_call.1} parent=15 // pred_check
          %p704 = pneg %p72
        $region56: #{tpu_custom_call.1} parent=15 // pred_check_branch
          %706 = sbr.rel (%p704) target = $region58
        $region57: #{tpu_custom_call.1} parent=15 // pred_region
          %p707 = scmp.lt.s32.totalorder %s19, 1
          %s708 = scalar_select %p707, %s19, 1
          %s709 = scalar_lea.vmem %s1, %s708
        $region58: #{tpu_custom_call.1} parent=15 // pred_fallthru
          _
        // Predicated region
        $region59: #{tpu_custom_call.1} parent=15 // pred_check
          %p710 = pneg %p98
        $region60: #{tpu_custom_call.1} parent=15 // pred_check_branch
          %712 = sbr.rel (%p710) target = $region62
        $region61: #{tpu_custom_call.1} parent=15 // pred_region
          %p713 = scmp.lt.s32.totalorder %s19, 1
          %s714 = scalar_select %p713, %s19, 1
          %s715 = scalar_lea.vmem %s2, %s714
        $region62: #{tpu_custom_call.1} parent=15 // pred_fallthru
          _
      $region16: #{tpu_custom_call.1} parent=5 // pred_fallthru
        _
      %p716 = scmp.le.s32.totalorder 1, %s12
      %p717 = scmp.lt.s32.totalorder %s12, 5
      %p718 = pnand %p716, %p717
      %p719 = pneg %p718
      // Predicated region
      $region63: #{tpu_custom_call.1} parent=5 // pred_check
        _
      $region64: #{tpu_custom_call.1} parent=5 // pred_check_branch
        %721 = sbr.rel (%p718) target = $region66
      $region65: #{tpu_custom_call.1} parent=5 // pred_region
        %s722 = ssub.s32 %s12, 1
        %s723 = sand.u32 %s39, 1
        %s724 = sand.u32 %s39, 1
        %s725 = smul.addr %s724, 1024
        %s726 = scalar_lea.vmem [#allocation2], %s725
        // Predicated region
        $region67: #{tpu_custom_call.1} parent=65 // pred_check
          %p727 = pneg %p52
        $region68: #{tpu_custom_call.1} parent=65 // pred_check_branch
          %729 = sbr.rel (%p727) target = $region70
        $region69: #{tpu_custom_call.1} parent=65 // pred_region
          _
        $region70: #{tpu_custom_call.1} parent=65 // pred_fallthru
          _
        %s730 = sand.u32 %s39, 1
        %s731 = sand.u32 %s39, 1
        %s732 = smul.addr %s731, 1024
        %s733 = scalar_lea.vmem [#allocation2], %s732
        %p734 = pneg %p52
        %p735 = pneg %p49
        %p736 = scmp.lt.s32.totalorder %s21, 1
        %s737 = scalar_select %p736, %s21, 1
        %s738 = scalar_lea.vmem %s1, %s737
        %p739 = pneg %p78
        %p740 = pneg %p75
        %p741 = scmp.lt.s32.totalorder %s21, 1
        %s742 = scalar_select %p741, %s21, 1
        %s743 = scalar_lea.vmem %s2, %s742
        %p744 = pneg %p104
        %p745 = pneg %p101
        %p746 = pneg %p132
        %p747 = pneg %p129
        %s748 = sand.u32 %s119, 1
        %s749 = scalar_lea.sflag [#allocation4], %s748
        %s750 = sand.u32 %s119, 1
        %s751 = smul.addr %s750, 8
        %s752 = scalar_lea.vmem [#allocation3], %s751
        %s753 = smul.u32 8, %s22
        %s754 = smul.u32 16, %s21
        %p755 = scmp.lt.s32.totalorder %s21, 1
        %s756 = scalar_select %p755, %s21, 1
        %s757 = scalar_lea.vmem %s1, %s756
        %p758 = scmp.lt.s32.totalorder %s21, 1
        %s759 = scalar_select %p758, %s21, 1
        %s760 = scalar_lea.vmem %s2, %s759
        %v761 = vld [vmem:[%s726] sm:$0xff]
        %v762 = vld [vmem:[%s726 + $0x8] sm:$0xff]
        %v763 = vld [vmem:[%s726 + $0x10] sm:$0xff]
        %v764 = vld [vmem:[%s726 + $0x18] sm:$0xff]
        %v765 = vld [vmem:[%s726 + $0x20] sm:$0xff]
        %v766 = vld [vmem:[%s726 + $0x28] sm:$0xff]
        %v767 = vld [vmem:[%s726 + $0x30] sm:$0xff]
        %v768 = vld [vmem:[%s726 + $0x38] sm:$0xff]
        %v769 = vld [vmem:[%s726 + $0x40] sm:$0xff]
        %v770 = vld [vmem:[%s726 + $0x48] sm:$0xff]
        %v771 = vld [vmem:[%s726 + $0x50] sm:$0xff]
        %v772 = vld [vmem:[%s726 + $0x58] sm:$0xff]
        %v773 = vld [vmem:[%s726 + $0x60] sm:$0xff]
        %v774 = vld [vmem:[%s726 + $0x68] sm:$0xff]
        %v775 = vld [vmem:[%s726 + $0x70] sm:$0xff]
        %v776 = vld [vmem:[%s726 + $0x78] sm:$0xff]
        %v777 = vld [vmem:[%s726 + $0x80] sm:$0xff]
        %v778 = vld [vmem:[%s726 + $0x88] sm:$0xff]
        %v779 = vld [vmem:[%s726 + $0x90] sm:$0xff]
        %v780 = vld [vmem:[%s726 + $0x98] sm:$0xff]
        %v781 = vld [vmem:[%s726 + $0xa0] sm:$0xff]
        %v782 = vld [vmem:[%s726 + $0xa8] sm:$0xff]
        %v783 = vld [vmem:[%s726 + $0xb0] sm:$0xff]
        %v784 = vld [vmem:[%s726 + $0xb8] sm:$0xff]
        %v785 = vld [vmem:[%s726 + $0xc0] sm:$0xff]
        %v786 = vld [vmem:[%s726 + $0xc8] sm:$0xff]
        %v787 = vld [vmem:[%s726 + $0xd0] sm:$0xff]
        %v788 = vld [vmem:[%s726 + $0xd8] sm:$0xff]
        %v789 = vld [vmem:[%s726 + $0xe0] sm:$0xff]
        %v790 = vld [vmem:[%s726 + $0xe8] sm:$0xff]
        %v791 = vld [vmem:[%s726 + $0xf0] sm:$0xff]
        %v792 = vld [vmem:[%s726 + $0xf8] sm:$0xff]
        %v793 = vld [vmem:[%s726 + $0x100] sm:$0xff]
        %v794 = vld [vmem:[%s726 + $0x108] sm:$0xff]
        %v795 = vld [vmem:[%s726 + $0x110] sm:$0xff]
        %v796 = vld [vmem:[%s726 + $0x118] sm:$0xff]
        %v797 = vld [vmem:[%s726 + $0x120] sm:$0xff]
        %v798 = vld [vmem:[%s726 + $0x128] sm:$0xff]
        %v799 = vld [vmem:[%s726 + $0x130] sm:$0xff]
        %v800 = vld [vmem:[%s726 + $0x138] sm:$0xff]
        %v801 = vld [vmem:[%s726 + $0x140] sm:$0xff]
        %v802 = vld [vmem:[%s726 + $0x148] sm:$0xff]
        %v803 = vld [vmem:[%s726 + $0x150] sm:$0xff]
        %v804 = vld [vmem:[%s726 + $0x158] sm:$0xff]
        %v805 = vld [vmem:[%s726 + $0x160] sm:$0xff]
        %v806 = vld [vmem:[%s726 + $0x168] sm:$0xff]
        %v807 = vld [vmem:[%s726 + $0x170] sm:$0xff]
        %v808 = vld [vmem:[%s726 + $0x178] sm:$0xff]
        %v809 = vld [vmem:[%s726 + $0x180] sm:$0xff]
        %v810 = vld [vmem:[%s726 + $0x188] sm:$0xff]
        %v811 = vld [vmem:[%s726 + $0x190] sm:$0xff]
        %v812 = vld [vmem:[%s726 + $0x198] sm:$0xff]
        %v813 = vld [vmem:[%s726 + $0x1a0] sm:$0xff]
        %v814 = vld [vmem:[%s726 + $0x1a8] sm:$0xff]
        %v815 = vld [vmem:[%s726 + $0x1b0] sm:$0xff]
        %v816 = vld [vmem:[%s726 + $0x1b8] sm:$0xff]
        %v817 = vld [vmem:[%s726 + $0x1c0] sm:$0xff]
        %v818 = vld [vmem:[%s726 + $0x1c8] sm:$0xff]
        %v819 = vld [vmem:[%s726 + $0x1d0] sm:$0xff]
        %v820 = vld [vmem:[%s726 + $0x1d8] sm:$0xff]
        %v821 = vld [vmem:[%s726 + $0x1e0] sm:$0xff]
        %v822 = vld [vmem:[%s726 + $0x1e8] sm:$0xff]
        %v823 = vld [vmem:[%s726 + $0x1f0] sm:$0xff]
        %v824 = vld [vmem:[%s726 + $0x1f8] sm:$0xff]
        %v825 = vld [vmem:[%s726 + $0x200] sm:$0xff]
        %v826 = vld [vmem:[%s726 + $0x208] sm:$0xff]
        %v827 = vld [vmem:[%s726 + $0x210] sm:$0xff]
        %v828 = vld [vmem:[%s726 + $0x218] sm:$0xff]
        %v829 = vld [vmem:[%s726 + $0x220] sm:$0xff]
        %v830 = vld [vmem:[%s726 + $0x228] sm:$0xff]
        %v831 = vld [vmem:[%s726 + $0x230] sm:$0xff]
        %v832 = vld [vmem:[%s726 + $0x238] sm:$0xff]
        %v833 = vld [vmem:[%s726 + $0x240] sm:$0xff]
        %v834 = vld [vmem:[%s726 + $0x248] sm:$0xff]
        %v835 = vld [vmem:[%s726 + $0x250] sm:$0xff]
        %v836 = vld [vmem:[%s726 + $0x258] sm:$0xff]
        %v837 = vld [vmem:[%s726 + $0x260] sm:$0xff]
        %v838 = vld [vmem:[%s726 + $0x268] sm:$0xff]
        %v839 = vld [vmem:[%s726 + $0x270] sm:$0xff]
        %v840 = vld [vmem:[%s726 + $0x278] sm:$0xff]
        %v841 = vld [vmem:[%s726 + $0x280] sm:$0xff]
        %v842 = vld [vmem:[%s726 + $0x288] sm:$0xff]
        %v843 = vld [vmem:[%s726 + $0x290] sm:$0xff]
        %v844 = vld [vmem:[%s726 + $0x298] sm:$0xff]
        %v845 = vld [vmem:[%s726 + $0x2a0] sm:$0xff]
        %v846 = vld [vmem:[%s726 + $0x2a8] sm:$0xff]
        %v847 = vld [vmem:[%s726 + $0x2b0] sm:$0xff]
        %v848 = vld [vmem:[%s726 + $0x2b8] sm:$0xff]
        %v849 = vld [vmem:[%s726 + $0x2c0] sm:$0xff]
        %v850 = vld [vmem:[%s726 + $0x2c8] sm:$0xff]
        %v851 = vld [vmem:[%s726 + $0x2d0] sm:$0xff]
        %v852 = vld [vmem:[%s726 + $0x2d8] sm:$0xff]
        %v853 = vld [vmem:[%s726 + $0x2e0] sm:$0xff]
        %v854 = vld [vmem:[%s726 + $0x2e8] sm:$0xff]
        %v855 = vld [vmem:[%s726 + $0x2f0] sm:$0xff]
        %v856 = vld [vmem:[%s726 + $0x2f8] sm:$0xff]
        %v857 = vld [vmem:[%s726 + $0x300] sm:$0xff]
        %v858 = vld [vmem:[%s726 + $0x308] sm:$0xff]
        %v859 = vld [vmem:[%s726 + $0x310] sm:$0xff]
        %v860 = vld [vmem:[%s726 + $0x318] sm:$0xff]
        %v861 = vld [vmem:[%s726 + $0x320] sm:$0xff]
        %v862 = vld [vmem:[%s726 + $0x328] sm:$0xff]
        %v863 = vld [vmem:[%s726 + $0x330] sm:$0xff]
        %v864 = vld [vmem:[%s726 + $0x338] sm:$0xff]
        %v865 = vld [vmem:[%s726 + $0x340] sm:$0xff]
        %v866 = vld [vmem:[%s726 + $0x348] sm:$0xff]
        %v867 = vld [vmem:[%s726 + $0x350] sm:$0xff]
        %v868 = vld [vmem:[%s726 + $0x358] sm:$0xff]
        %v869 = vld [vmem:[%s726 + $0x360] sm:$0xff]
        %v870 = vld [vmem:[%s726 + $0x368] sm:$0xff]
        %v871 = vld [vmem:[%s726 + $0x370] sm:$0xff]
        %v872 = vld [vmem:[%s726 + $0x378] sm:$0xff]
        %v873 = vld [vmem:[%s726 + $0x380] sm:$0xff]
        %v874 = vld [vmem:[%s726 + $0x388] sm:$0xff]
        %v875 = vld [vmem:[%s726 + $0x390] sm:$0xff]
        %v876 = vld [vmem:[%s726 + $0x398] sm:$0xff]
        %v877 = vld [vmem:[%s726 + $0x3a0] sm:$0xff]
        %v878 = vld [vmem:[%s726 + $0x3a8] sm:$0xff]
        %v879 = vld [vmem:[%s726 + $0x3b0] sm:$0xff]
        %v880 = vld [vmem:[%s726 + $0x3b8] sm:$0xff]
        %v881 = vld [vmem:[%s726 + $0x3c0] sm:$0xff]
        %v882 = vld [vmem:[%s726 + $0x3c8] sm:$0xff]
        %v883 = vld [vmem:[%s726 + $0x3d0] sm:$0xff]
        %v884 = vld [vmem:[%s726 + $0x3d8] sm:$0xff]
        %v885 = vld [vmem:[%s726 + $0x3e0] sm:$0xff]
        %v886 = vld [vmem:[%s726 + $0x3e8] sm:$0xff]
        %v887 = vld [vmem:[%s726 + $0x3f0] sm:$0xff]
        %v888 = vld [vmem:[%s726 + $0x3f8] sm:$0xff]
        %vm889 = vcmask 523264
        %v890 = vsel %vm889, %v761, 0.0
        %891 = vadd.xlane.f32.xlu0 %v890
        %v892 = vpop.xlane.xlu0 %891
        %v893 = vsel %vm889, %v762, 0.0
        %894 = vadd.xlane.f32.xlu0 %v893
        %v895 = vpop.xlane.xlu0 %894
        %v896 = vsel %vm889, %v763, 0.0
        %897 = vadd.xlane.f32.xlu0 %v896
        %v898 = vpop.xlane.xlu0 %897
        %v899 = vsel %vm889, %v764, 0.0
        %900 = vadd.xlane.f32.xlu0 %v899
        %v901 = vpop.xlane.xlu0 %900
        %v902 = vsel %vm889, %v765, 0.0
        %903 = vadd.xlane.f32.xlu0 %v902
        %v904 = vpop.xlane.xlu0 %903
        %v905 = vsel %vm889, %v766, 0.0
        %906 = vadd.xlane.f32.xlu0 %v905
        %v907 = vpop.xlane.xlu0 %906
        %v908 = vsel %vm889, %v767, 0.0
        %909 = vadd.xlane.f32.xlu0 %v908
        %v910 = vpop.xlane.xlu0 %909
        %v911 = vsel %vm889, %v768, 0.0
        %912 = vadd.xlane.f32.xlu0 %v911
        %v913 = vpop.xlane.xlu0 %912
        %v914 = vsel %vm889, %v769, 0.0
        %915 = vadd.xlane.f32.xlu0 %v914
        %v916 = vpop.xlane.xlu0 %915
        %v917 = vsel %vm889, %v770, 0.0
        %918 = vadd.xlane.f32.xlu0 %v917
        %v919 = vpop.xlane.xlu0 %918
        %v920 = vsel %vm889, %v771, 0.0
        %921 = vadd.xlane.f32.xlu0 %v920
        %v922 = vpop.xlane.xlu0 %921
        %v923 = vsel %vm889, %v772, 0.0
        %924 = vadd.xlane.f32.xlu0 %v923
        %v925 = vpop.xlane.xlu0 %924
        %v926 = vsel %vm889, %v773, 0.0
        %927 = vadd.xlane.f32.xlu0 %v926
        %v928 = vpop.xlane.xlu0 %927
        %v929 = vsel %vm889, %v774, 0.0
        %930 = vadd.xlane.f32.xlu0 %v929
        %v931 = vpop.xlane.xlu0 %930
        %v932 = vsel %vm889, %v775, 0.0
        %933 = vadd.xlane.f32.xlu0 %v932
        %v934 = vpop.xlane.xlu0 %933
        %v935 = vsel %vm889, %v776, 0.0
        %936 = vadd.xlane.f32.xlu0 %v935
        %v937 = vpop.xlane.xlu0 %936
        %v938 = vsel %vm889, %v777, 0.0
        %939 = vadd.xlane.f32.xlu0 %v938
        %v940 = vpop.xlane.xlu0 %939
        %v941 = vsel %vm889, %v778, 0.0
        %942 = vadd.xlane.f32.xlu0 %v941
        %v943 = vpop.xlane.xlu0 %942
        %v944 = vsel %vm889, %v779, 0.0
        %945 = vadd.xlane.f32.xlu0 %v944
        %v946 = vpop.xlane.xlu0 %945
        %v947 = vsel %vm889, %v780, 0.0
        %948 = vadd.xlane.f32.xlu0 %v947
        %v949 = vpop.xlane.xlu0 %948
        %v950 = vsel %vm889, %v781, 0.0
        %951 = vadd.xlane.f32.xlu0 %v950
        %v952 = vpop.xlane.xlu0 %951
        %v953 = vsel %vm889, %v782, 0.0
        %954 = vadd.xlane.f32.xlu0 %v953
        %v955 = vpop.xlane.xlu0 %954
        %v956 = vsel %vm889, %v783, 0.0
        %957 = vadd.xlane.f32.xlu0 %v956
        %v958 = vpop.xlane.xlu0 %957
        %v959 = vsel %vm889, %v784, 0.0
        %960 = vadd.xlane.f32.xlu0 %v959
        %v961 = vpop.xlane.xlu0 %960
        %v962 = vsel %vm889, %v785, 0.0
        %963 = vadd.xlane.f32.xlu0 %v962
        %v964 = vpop.xlane.xlu0 %963
        %v965 = vsel %vm889, %v786, 0.0
        %966 = vadd.xlane.f32.xlu0 %v965
        %v967 = vpop.xlane.xlu0 %966
        %v968 = vsel %vm889, %v787, 0.0
        %969 = vadd.xlane.f32.xlu0 %v968
        %v970 = vpop.xlane.xlu0 %969
        %v971 = vsel %vm889, %v788, 0.0
        %972 = vadd.xlane.f32.xlu0 %v971
        %v973 = vpop.xlane.xlu0 %972
        %v974 = vsel %vm889, %v789, 0.0
        %975 = vadd.xlane.f32.xlu0 %v974
        %v976 = vpop.xlane.xlu0 %975
        %v977 = vsel %vm889, %v790, 0.0
        %978 = vadd.xlane.f32.xlu0 %v977
        %v979 = vpop.xlane.xlu0 %978
        %v980 = vsel %vm889, %v791, 0.0
        %981 = vadd.xlane.f32.xlu0 %v980
        %v982 = vpop.xlane.xlu0 %981
        %v983 = vsel %vm889, %v792, 0.0
        %984 = vadd.xlane.f32.xlu0 %v983
        %v985 = vpop.xlane.xlu0 %984
        %v986 = vsel %vm889, %v793, 0.0
        %987 = vadd.xlane.f32.xlu0 %v986
        %v988 = vpop.xlane.xlu0 %987
        %v989 = vsel %vm889, %v794, 0.0
        %990 = vadd.xlane.f32.xlu0 %v989
        %v991 = vpop.xlane.xlu0 %990
        %v992 = vsel %vm889, %v795, 0.0
        %993 = vadd.xlane.f32.xlu0 %v992
        %v994 = vpop.xlane.xlu0 %993
        %v995 = vsel %vm889, %v796, 0.0
        %996 = vadd.xlane.f32.xlu0 %v995
        %v997 = vpop.xlane.xlu0 %996
        %v998 = vsel %vm889, %v797, 0.0
        %999 = vadd.xlane.f32.xlu0 %v998
        %v1000 = vpop.xlane.xlu0 %999
        %v1001 = vsel %vm889, %v798, 0.0
        %1002 = vadd.xlane.f32.xlu0 %v1001
        %v1003 = vpop.xlane.xlu0 %1002
        %v1004 = vsel %vm889, %v799, 0.0
        %1005 = vadd.xlane.f32.xlu0 %v1004
        %v1006 = vpop.xlane.xlu0 %1005
        %v1007 = vsel %vm889, %v800, 0.0
        %1008 = vadd.xlane.f32.xlu0 %v1007
        %v1009 = vpop.xlane.xlu0 %1008
        %v1010 = vsel %vm889, %v801, 0.0
        %1011 = vadd.xlane.f32.xlu0 %v1010
        %v1012 = vpop.xlane.xlu0 %1011
        %v1013 = vsel %vm889, %v802, 0.0
        %1014 = vadd.xlane.f32.xlu0 %v1013
        %v1015 = vpop.xlane.xlu0 %1014
        %v1016 = vsel %vm889, %v803, 0.0
        %1017 = vadd.xlane.f32.xlu0 %v1016
        %v1018 = vpop.xlane.xlu0 %1017
        %v1019 = vsel %vm889, %v804, 0.0
        %1020 = vadd.xlane.f32.xlu0 %v1019
        %v1021 = vpop.xlane.xlu0 %1020
        %v1022 = vsel %vm889, %v805, 0.0
        %1023 = vadd.xlane.f32.xlu0 %v1022
        %v1024 = vpop.xlane.xlu0 %1023
        %v1025 = vsel %vm889, %v806, 0.0
        %1026 = vadd.xlane.f32.xlu0 %v1025
        %v1027 = vpop.xlane.xlu0 %1026
        %v1028 = vsel %vm889, %v807, 0.0
        %1029 = vadd.xlane.f32.xlu0 %v1028
        %v1030 = vpop.xlane.xlu0 %1029
        %v1031 = vsel %vm889, %v808, 0.0
        %1032 = vadd.xlane.f32.xlu0 %v1031
        %v1033 = vpop.xlane.xlu0 %1032
        %v1034 = vsel %vm889, %v809, 0.0
        %1035 = vadd.xlane.f32.xlu0 %v1034
        %v1036 = vpop.xlane.xlu0 %1035
        %v1037 = vsel %vm889, %v810, 0.0
        %1038 = vadd.xlane.f32.xlu0 %v1037
        %v1039 = vpop.xlane.xlu0 %1038
        %v1040 = vsel %vm889, %v811, 0.0
        %1041 = vadd.xlane.f32.xlu0 %v1040
        %v1042 = vpop.xlane.xlu0 %1041
        %v1043 = vsel %vm889, %v812, 0.0
        %1044 = vadd.xlane.f32.xlu0 %v1043
        %v1045 = vpop.xlane.xlu0 %1044
        %v1046 = vsel %vm889, %v813, 0.0
        %1047 = vadd.xlane.f32.xlu0 %v1046
        %v1048 = vpop.xlane.xlu0 %1047
        %v1049 = vsel %vm889, %v814, 0.0
        %1050 = vadd.xlane.f32.xlu0 %v1049
        %v1051 = vpop.xlane.xlu0 %1050
        %v1052 = vsel %vm889, %v815, 0.0
        %1053 = vadd.xlane.f32.xlu0 %v1052
        %v1054 = vpop.xlane.xlu0 %1053
        %v1055 = vsel %vm889, %v816, 0.0
        %1056 = vadd.xlane.f32.xlu0 %v1055
        %v1057 = vpop.xlane.xlu0 %1056
        %v1058 = vsel %vm889, %v817, 0.0
        %1059 = vadd.xlane.f32.xlu0 %v1058
        %v1060 = vpop.xlane.xlu0 %1059
        %v1061 = vsel %vm889, %v818, 0.0
        %1062 = vadd.xlane.f32.xlu0 %v1061
        %v1063 = vpop.xlane.xlu0 %1062
        %v1064 = vsel %vm889, %v819, 0.0
        %1065 = vadd.xlane.f32.xlu0 %v1064
        %v1066 = vpop.xlane.xlu0 %1065
        %v1067 = vsel %vm889, %v820, 0.0
        %1068 = vadd.xlane.f32.xlu0 %v1067
        %v1069 = vpop.xlane.xlu0 %1068
        %v1070 = vsel %vm889, %v821, 0.0
        %1071 = vadd.xlane.f32.xlu0 %v1070
        %v1072 = vpop.xlane.xlu0 %1071
        %v1073 = vsel %vm889, %v822, 0.0
        %1074 = vadd.xlane.f32.xlu0 %v1073
        %v1075 = vpop.xlane.xlu0 %1074
        %v1076 = vsel %vm889, %v823, 0.0
        %1077 = vadd.xlane.f32.xlu0 %v1076
        %v1078 = vpop.xlane.xlu0 %1077
        %v1079 = vsel %vm889, %v824, 0.0
        %1080 = vadd.xlane.f32.xlu0 %v1079
        %v1081 = vpop.xlane.xlu0 %1080
        %v1082 = vsel %vm889, %v825, 0.0
        %1083 = vadd.xlane.f32.xlu0 %v1082
        %v1084 = vpop.xlane.xlu0 %1083
        %v1085 = vsel %vm889, %v826, 0.0
        %1086 = vadd.xlane.f32.xlu0 %v1085
        %v1087 = vpop.xlane.xlu0 %1086
        %v1088 = vsel %vm889, %v827, 0.0
        %1089 = vadd.xlane.f32.xlu0 %v1088
        %v1090 = vpop.xlane.xlu0 %1089
        %v1091 = vsel %vm889, %v828, 0.0
        %1092 = vadd.xlane.f32.xlu0 %v1091
        %v1093 = vpop.xlane.xlu0 %1092
        %v1094 = vsel %vm889, %v829, 0.0
        %1095 = vadd.xlane.f32.xlu0 %v1094
        %v1096 = vpop.xlane.xlu0 %1095
        %v1097 = vsel %vm889, %v830, 0.0
        %1098 = vadd.xlane.f32.xlu0 %v1097
        %v1099 = vpop.xlane.xlu0 %1098
        %v1100 = vsel %vm889, %v831, 0.0
        %1101 = vadd.xlane.f32.xlu0 %v1100
        %v1102 = vpop.xlane.xlu0 %1101
        %v1103 = vsel %vm889, %v832, 0.0
        %1104 = vadd.xlane.f32.xlu0 %v1103
        %v1105 = vpop.xlane.xlu0 %1104
        %v1106 = vsel %vm889, %v833, 0.0
        %1107 = vadd.xlane.f32.xlu0 %v1106
        %v1108 = vpop.xlane.xlu0 %1107
        %v1109 = vsel %vm889, %v834, 0.0
        %1110 = vadd.xlane.f32.xlu0 %v1109
        %v1111 = vpop.xlane.xlu0 %1110
        %v1112 = vsel %vm889, %v835, 0.0
        %1113 = vadd.xlane.f32.xlu0 %v1112
        %v1114 = vpop.xlane.xlu0 %1113
        %v1115 = vsel %vm889, %v836, 0.0
        %1116 = vadd.xlane.f32.xlu0 %v1115
        %v1117 = vpop.xlane.xlu0 %1116
        %v1118 = vsel %vm889, %v837, 0.0
        %1119 = vadd.xlane.f32.xlu0 %v1118
        %v1120 = vpop.xlane.xlu0 %1119
        %v1121 = vsel %vm889, %v838, 0.0
        %1122 = vadd.xlane.f32.xlu0 %v1121
        %v1123 = vpop.xlane.xlu0 %1122
        %v1124 = vsel %vm889, %v839, 0.0
        %1125 = vadd.xlane.f32.xlu0 %v1124
        %v1126 = vpop.xlane.xlu0 %1125
        %v1127 = vsel %vm889, %v840, 0.0
        %1128 = vadd.xlane.f32.xlu0 %v1127
        %v1129 = vpop.xlane.xlu0 %1128
        %v1130 = vsel %vm889, %v841, 0.0
        %1131 = vadd.xlane.f32.xlu0 %v1130
        %v1132 = vpop.xlane.xlu0 %1131
        %v1133 = vsel %vm889, %v842, 0.0
        %1134 = vadd.xlane.f32.xlu0 %v1133
        %v1135 = vpop.xlane.xlu0 %1134
        %v1136 = vsel %vm889, %v843, 0.0
        %1137 = vadd.xlane.f32.xlu0 %v1136
        %v1138 = vpop.xlane.xlu0 %1137
        %v1139 = vsel %vm889, %v844, 0.0
        %1140 = vadd.xlane.f32.xlu0 %v1139
        %v1141 = vpop.xlane.xlu0 %1140
        %v1142 = vsel %vm889, %v845, 0.0
        %1143 = vadd.xlane.f32.xlu0 %v1142
        %v1144 = vpop.xlane.xlu0 %1143
        %v1145 = vsel %vm889, %v846, 0.0
        %1146 = vadd.xlane.f32.xlu0 %v1145
        %v1147 = vpop.xlane.xlu0 %1146
        %v1148 = vsel %vm889, %v847, 0.0
        %1149 = vadd.xlane.f32.xlu0 %v1148
        %v1150 = vpop.xlane.xlu0 %1149
        %v1151 = vsel %vm889, %v848, 0.0
        %1152 = vadd.xlane.f32.xlu0 %v1151
        %v1153 = vpop.xlane.xlu0 %1152
        %v1154 = vsel %vm889, %v849, 0.0
        %1155 = vadd.xlane.f32.xlu0 %v1154
        %v1156 = vpop.xlane.xlu0 %1155
        %v1157 = vsel %vm889, %v850, 0.0
        %1158 = vadd.xlane.f32.xlu0 %v1157
        %v1159 = vpop.xlane.xlu0 %1158
        %v1160 = vsel %vm889, %v851, 0.0
        %1161 = vadd.xlane.f32.xlu0 %v1160
        %v1162 = vpop.xlane.xlu0 %1161
        %v1163 = vsel %vm889, %v852, 0.0
        %1164 = vadd.xlane.f32.xlu0 %v1163
        %v1165 = vpop.xlane.xlu0 %1164
        %v1166 = vsel %vm889, %v853, 0.0
        %1167 = vadd.xlane.f32.xlu0 %v1166
        %v1168 = vpop.xlane.xlu0 %1167
        %v1169 = vsel %vm889, %v854, 0.0
        %1170 = vadd.xlane.f32.xlu0 %v1169
        %v1171 = vpop.xlane.xlu0 %1170
        %v1172 = vsel %vm889, %v855, 0.0
        %1173 = vadd.xlane.f32.xlu0 %v1172
        %v1174 = vpop.xlane.xlu0 %1173
        %v1175 = vsel %vm889, %v856, 0.0
        %1176 = vadd.xlane.f32.xlu0 %v1175
        %v1177 = vpop.xlane.xlu0 %1176
        %v1178 = vsel %vm889, %v857, 0.0
        %1179 = vadd.xlane.f32.xlu0 %v1178
        %v1180 = vpop.xlane.xlu0 %1179
        %v1181 = vsel %vm889, %v858, 0.0
        %1182 = vadd.xlane.f32.xlu0 %v1181
        %v1183 = vpop.xlane.xlu0 %1182
        %v1184 = vsel %vm889, %v859, 0.0
        %1185 = vadd.xlane.f32.xlu0 %v1184
        %v1186 = vpop.xlane.xlu0 %1185
        %v1187 = vsel %vm889, %v860, 0.0
        %1188 = vadd.xlane.f32.xlu0 %v1187
        %v1189 = vpop.xlane.xlu0 %1188
        %v1190 = vsel %vm889, %v861, 0.0
        %1191 = vadd.xlane.f32.xlu0 %v1190
        %v1192 = vpop.xlane.xlu0 %1191
        %v1193 = vsel %vm889, %v862, 0.0
        %1194 = vadd.xlane.f32.xlu0 %v1193
        %v1195 = vpop.xlane.xlu0 %1194
        %v1196 = vsel %vm889, %v863, 0.0
        %1197 = vadd.xlane.f32.xlu0 %v1196
        %v1198 = vpop.xlane.xlu0 %1197
        %v1199 = vsel %vm889, %v864, 0.0
        %1200 = vadd.xlane.f32.xlu0 %v1199
        %v1201 = vpop.xlane.xlu0 %1200
        %v1202 = vsel %vm889, %v865, 0.0
        %1203 = vadd.xlane.f32.xlu0 %v1202
        %v1204 = vpop.xlane.xlu0 %1203
        %v1205 = vsel %vm889, %v866, 0.0
        %1206 = vadd.xlane.f32.xlu0 %v1205
        %v1207 = vpop.xlane.xlu0 %1206
        %v1208 = vsel %vm889, %v867, 0.0
        %1209 = vadd.xlane.f32.xlu0 %v1208
        %v1210 = vpop.xlane.xlu0 %1209
        %v1211 = vsel %vm889, %v868, 0.0
        %1212 = vadd.xlane.f32.xlu0 %v1211
        %v1213 = vpop.xlane.xlu0 %1212
        %v1214 = vsel %vm889, %v869, 0.0
        %1215 = vadd.xlane.f32.xlu0 %v1214
        %v1216 = vpop.xlane.xlu0 %1215
        %v1217 = vsel %vm889, %v870, 0.0
        %1218 = vadd.xlane.f32.xlu0 %v1217
        %v1219 = vpop.xlane.xlu0 %1218
        %v1220 = vsel %vm889, %v871, 0.0
        %1221 = vadd.xlane.f32.xlu0 %v1220
        %v1222 = vpop.xlane.xlu0 %1221
        %v1223 = vsel %vm889, %v872, 0.0
        %1224 = vadd.xlane.f32.xlu0 %v1223
        %v1225 = vpop.xlane.xlu0 %1224
        %v1226 = vsel %vm889, %v873, 0.0
        %1227 = vadd.xlane.f32.xlu0 %v1226
        %v1228 = vpop.xlane.xlu0 %1227
        %v1229 = vsel %vm889, %v874, 0.0
        %1230 = vadd.xlane.f32.xlu0 %v1229
        %v1231 = vpop.xlane.xlu0 %1230
        %v1232 = vsel %vm889, %v875, 0.0
        %1233 = vadd.xlane.f32.xlu0 %v1232
        %v1234 = vpop.xlane.xlu0 %1233
        %v1235 = vsel %vm889, %v876, 0.0
        %1236 = vadd.xlane.f32.xlu0 %v1235
        %v1237 = vpop.xlane.xlu0 %1236
        %v1238 = vsel %vm889, %v877, 0.0
        %1239 = vadd.xlane.f32.xlu0 %v1238
        %v1240 = vpop.xlane.xlu0 %1239
        %v1241 = vsel %vm889, %v878, 0.0
        %1242 = vadd.xlane.f32.xlu0 %v1241
        %v1243 = vpop.xlane.xlu0 %1242
        %v1244 = vsel %vm889, %v879, 0.0
        %1245 = vadd.xlane.f32.xlu0 %v1244
        %v1246 = vpop.xlane.xlu0 %1245
        %v1247 = vsel %vm889, %v880, 0.0
        %1248 = vadd.xlane.f32.xlu0 %v1247
        %v1249 = vpop.xlane.xlu0 %1248
        %v1250 = vsel %vm889, %v881, 0.0
        %1251 = vadd.xlane.f32.xlu0 %v1250
        %v1252 = vpop.xlane.xlu0 %1251
        %v1253 = vsel %vm889, %v882, 0.0
        %1254 = vadd.xlane.f32.xlu0 %v1253
        %v1255 = vpop.xlane.xlu0 %1254
        %v1256 = vsel %vm889, %v883, 0.0
        %1257 = vadd.xlane.f32.xlu0 %v1256
        %v1258 = vpop.xlane.xlu0 %1257
        %v1259 = vsel %vm889, %v884, 0.0
        %1260 = vadd.xlane.f32.xlu0 %v1259
        %v1261 = vpop.xlane.xlu0 %1260
        %v1262 = vsel %vm889, %v885, 0.0
        %1263 = vadd.xlane.f32.xlu0 %v1262
        %v1264 = vpop.xlane.xlu0 %1263
        %v1265 = vsel %vm889, %v886, 0.0
        %1266 = vadd.xlane.f32.xlu0 %v1265
        %v1267 = vpop.xlane.xlu0 %1266
        %v1268 = vsel %vm889, %v887, 0.0
        %1269 = vadd.xlane.f32.xlu0 %v1268
        %v1270 = vpop.xlane.xlu0 %1269
        %v1271 = vsel %vm889, %v888, 0.0
        %1272 = vadd.xlane.f32.xlu0 %v1271
        %v1273 = vpop.xlane.xlu0 %1272
        %v1274 = vld [vmem:[%s757] sm:$0x1]
        %v1276 = vlaneseq
        %v1277 = vshrl.u32 %v1276, 7
        %v1278 = vsub.s32 0, %v1277
        %v1279 = vrot.slane %v1274, %v1278
        %1281 = vbcast.lane.b32.xlu0 %v1279, 256
        %v1282 = vpop.permute.xlu0 %1281
        %s1284 = sor.u32 256, 8
        %1285 = vbcast.lane.b32.xlu0 %v1279, %s1284
        %v1286 = vpop.permute.xlu0 %1285
        %s1288 = sor.u32 256, 16
        %1289 = vbcast.lane.b32.xlu0 %v1279, %s1288
        %v1290 = vpop.permute.xlu0 %1289
        %s1292 = sor.u32 256, 24
        %1293 = vbcast.lane.b32.xlu0 %v1279, %s1292
        %v1294 = vpop.permute.xlu0 %1293
        %s1296 = sor.u32 256, 32
        %1297 = vbcast.lane.b32.xlu0 %v1279, %s1296
        %v1298 = vpop.permute.xlu0 %1297
        %s1300 = sor.u32 256, 40
        %1301 = vbcast.lane.b32.xlu0 %v1279, %s1300
        %v1302 = vpop.permute.xlu0 %1301
        %s1304 = sor.u32 256, 48
        %1305 = vbcast.lane.b32.xlu0 %v1279, %s1304
        %v1306 = vpop.permute.xlu0 %1305
        %s1308 = sor.u32 256, 56
        %1309 = vbcast.lane.b32.xlu0 %v1279, %s1308
        %v1310 = vpop.permute.xlu0 %1309
        %s1312 = sor.u32 256, 64
        %1313 = vbcast.lane.b32.xlu0 %v1279, %s1312
        %v1314 = vpop.permute.xlu0 %1313
        %s1316 = sor.u32 256, 72
        %1317 = vbcast.lane.b32.xlu0 %v1279, %s1316
        %v1318 = vpop.permute.xlu0 %1317
        %s1320 = sor.u32 256, 80
        %1321 = vbcast.lane.b32.xlu0 %v1279, %s1320
        %v1322 = vpop.permute.xlu0 %1321
        %s1324 = sor.u32 256, 88
        %1325 = vbcast.lane.b32.xlu0 %v1279, %s1324
        %v1326 = vpop.permute.xlu0 %1325
        %s1328 = sor.u32 256, 96
        %1329 = vbcast.lane.b32.xlu0 %v1279, %s1328
        %v1330 = vpop.permute.xlu0 %1329
        %s1332 = sor.u32 256, 104
        %1333 = vbcast.lane.b32.xlu0 %v1279, %s1332
        %v1334 = vpop.permute.xlu0 %1333
        %s1336 = sor.u32 256, 112
        %1337 = vbcast.lane.b32.xlu0 %v1279, %s1336
        %v1338 = vpop.permute.xlu0 %1337
        %s1340 = sor.u32 256, 120
        %1341 = vbcast.lane.b32.xlu0 %v1279, %s1340
        %v1342 = vpop.permute.xlu0 %1341
        %v1359 = vmul.f32 %v892, %v1282
        %v1360 = vmul.f32 %v895, %v1286
        %v1361 = vmul.f32 %v898, %v1290
        %v1362 = vmul.f32 %v901, %v1294
        %v1363 = vmul.f32 %v904, %v1298
        %v1364 = vmul.f32 %v907, %v1302
        %v1365 = vmul.f32 %v910, %v1306
        %v1366 = vmul.f32 %v913, %v1310
        %v1367 = vmul.f32 %v916, %v1314
        %v1368 = vmul.f32 %v919, %v1318
        %v1369 = vmul.f32 %v922, %v1322
        %v1370 = vmul.f32 %v925, %v1326
        %v1371 = vmul.f32 %v928, %v1330
        %v1372 = vmul.f32 %v931, %v1334
        %v1373 = vmul.f32 %v934, %v1338
        %v1374 = vmul.f32 %v937, %v1342
        %v1375 = vmul.f32 %v940, %v1282
        %v1376 = vmul.f32 %v943, %v1286
        %v1377 = vmul.f32 %v946, %v1290
        %v1378 = vmul.f32 %v949, %v1294
        %v1379 = vmul.f32 %v952, %v1298
        %v1380 = vmul.f32 %v955, %v1302
        %v1381 = vmul.f32 %v958, %v1306
        %v1382 = vmul.f32 %v961, %v1310
        %v1383 = vmul.f32 %v964, %v1314
        %v1384 = vmul.f32 %v967, %v1318
        %v1385 = vmul.f32 %v970, %v1322
        %v1386 = vmul.f32 %v973, %v1326
        %v1387 = vmul.f32 %v976, %v1330
        %v1388 = vmul.f32 %v979, %v1334
        %v1389 = vmul.f32 %v982, %v1338
        %v1390 = vmul.f32 %v985, %v1342
        %v1391 = vmul.f32 %v988, %v1282
        %v1392 = vmul.f32 %v991, %v1286
        %v1393 = vmul.f32 %v994, %v1290
        %v1394 = vmul.f32 %v997, %v1294
        %v1395 = vmul.f32 %v1000, %v1298
        %v1396 = vmul.f32 %v1003, %v1302
        %v1397 = vmul.f32 %v1006, %v1306
        %v1398 = vmul.f32 %v1009, %v1310
        %v1399 = vmul.f32 %v1012, %v1314
        %v1400 = vmul.f32 %v1015, %v1318
        %v1401 = vmul.f32 %v1018, %v1322
        %v1402 = vmul.f32 %v1021, %v1326
        %v1403 = vmul.f32 %v1024, %v1330
        %v1404 = vmul.f32 %v1027, %v1334
        %v1405 = vmul.f32 %v1030, %v1338
        %v1406 = vmul.f32 %v1033, %v1342
        %v1407 = vmul.f32 %v1036, %v1282
        %v1408 = vmul.f32 %v1039, %v1286
        %v1409 = vmul.f32 %v1042, %v1290
        %v1410 = vmul.f32 %v1045, %v1294
        %v1411 = vmul.f32 %v1048, %v1298
        %v1412 = vmul.f32 %v1051, %v1302
        %v1413 = vmul.f32 %v1054, %v1306
        %v1414 = vmul.f32 %v1057, %v1310
        %v1415 = vmul.f32 %v1060, %v1314
        %v1416 = vmul.f32 %v1063, %v1318
        %v1417 = vmul.f32 %v1066, %v1322
        %v1418 = vmul.f32 %v1069, %v1326
        %v1419 = vmul.f32 %v1072, %v1330
        %v1420 = vmul.f32 %v1075, %v1334
        %v1421 = vmul.f32 %v1078, %v1338
        %v1422 = vmul.f32 %v1081, %v1342
        %v1423 = vmul.f32 %v1084, %v1282
        %v1424 = vmul.f32 %v1087, %v1286
        %v1425 = vmul.f32 %v1090, %v1290
        %v1426 = vmul.f32 %v1093, %v1294
        %v1427 = vmul.f32 %v1096, %v1298
        %v1428 = vmul.f32 %v1099, %v1302
        %v1429 = vmul.f32 %v1102, %v1306
        %v1430 = vmul.f32 %v1105, %v1310
        %v1431 = vmul.f32 %v1108, %v1314
        %v1432 = vmul.f32 %v1111, %v1318
        %v1433 = vmul.f32 %v1114, %v1322
        %v1434 = vmul.f32 %v1117, %v1326
        %v1435 = vmul.f32 %v1120, %v1330
        %v1436 = vmul.f32 %v1123, %v1334
        %v1437 = vmul.f32 %v1126, %v1338
        %v1438 = vmul.f32 %v1129, %v1342
        %v1439 = vmul.f32 %v1132, %v1282
        %v1440 = vmul.f32 %v1135, %v1286
        %v1441 = vmul.f32 %v1138, %v1290
        %v1442 = vmul.f32 %v1141, %v1294
        %v1443 = vmul.f32 %v1144, %v1298
        %v1444 = vmul.f32 %v1147, %v1302
        %v1445 = vmul.f32 %v1150, %v1306
        %v1446 = vmul.f32 %v1153, %v1310
        %v1447 = vmul.f32 %v1156, %v1314
        %v1448 = vmul.f32 %v1159, %v1318
        %v1449 = vmul.f32 %v1162, %v1322
        %v1450 = vmul.f32 %v1165, %v1326
        %v1451 = vmul.f32 %v1168, %v1330
        %v1452 = vmul.f32 %v1171, %v1334
        %v1453 = vmul.f32 %v1174, %v1338
        %v1454 = vmul.f32 %v1177, %v1342
        %v1455 = vmul.f32 %v1180, %v1282
        %v1456 = vmul.f32 %v1183, %v1286
        %v1457 = vmul.f32 %v1186, %v1290
        %v1458 = vmul.f32 %v1189, %v1294
        %v1459 = vmul.f32 %v1192, %v1298
        %v1460 = vmul.f32 %v1195, %v1302
        %v1461 = vmul.f32 %v1198, %v1306
        %v1462 = vmul.f32 %v1201, %v1310
        %v1463 = vmul.f32 %v1204, %v1314
        %v1464 = vmul.f32 %v1207, %v1318
        %v1465 = vmul.f32 %v1210, %v1322
        %v1466 = vmul.f32 %v1213, %v1326
        %v1467 = vmul.f32 %v1216, %v1330
        %v1468 = vmul.f32 %v1219, %v1334
        %v1469 = vmul.f32 %v1222, %v1338
        %v1470 = vmul.f32 %v1225, %v1342
        %v1471 = vmul.f32 %v1228, %v1282
        %v1472 = vmul.f32 %v1231, %v1286
        %v1473 = vmul.f32 %v1234, %v1290
        %v1474 = vmul.f32 %v1237, %v1294
        %v1475 = vmul.f32 %v1240, %v1298
        %v1476 = vmul.f32 %v1243, %v1302
        %v1477 = vmul.f32 %v1246, %v1306
        %v1478 = vmul.f32 %v1249, %v1310
        %v1479 = vmul.f32 %v1252, %v1314
        %v1480 = vmul.f32 %v1255, %v1318
        %v1481 = vmul.f32 %v1258, %v1322
        %v1482 = vmul.f32 %v1261, %v1326
        %v1483 = vmul.f32 %v1264, %v1330
        %v1484 = vmul.f32 %v1267, %v1334
        %v1485 = vmul.f32 %v1270, %v1338
        %v1486 = vmul.f32 %v1273, %v1342
        %v1487 = vld [vmem:[%s760] sm:$0x1]
        %v1489 = vlaneseq
        %v1490 = vshrl.u32 %v1489, 7
        %v1491 = vsub.s32 0, %v1490
        %v1492 = vrot.slane %v1487, %v1491
        %1494 = vbcast.lane.b32.xlu0 %v1492, 256
        %v1495 = vpop.permute.xlu0 %1494
        %s1497 = sor.u32 256, 8
        %1498 = vbcast.lane.b32.xlu0 %v1492, %s1497
        %v1499 = vpop.permute.xlu0 %1498
        %s1501 = sor.u32 256, 16
        %1502 = vbcast.lane.b32.xlu0 %v1492, %s1501
        %v1503 = vpop.permute.xlu0 %1502
        %s1505 = sor.u32 256, 24
        %1506 = vbcast.lane.b32.xlu0 %v1492, %s1505
        %v1507 = vpop.permute.xlu0 %1506
        %s1509 = sor.u32 256, 32
        %1510 = vbcast.lane.b32.xlu0 %v1492, %s1509
        %v1511 = vpop.permute.xlu0 %1510
        %s1513 = sor.u32 256, 40
        %1514 = vbcast.lane.b32.xlu0 %v1492, %s1513
        %v1515 = vpop.permute.xlu0 %1514
        %s1517 = sor.u32 256, 48
        %1518 = vbcast.lane.b32.xlu0 %v1492, %s1517
        %v1519 = vpop.permute.xlu0 %1518
        %s1521 = sor.u32 256, 56
        %1522 = vbcast.lane.b32.xlu0 %v1492, %s1521
        %v1523 = vpop.permute.xlu0 %1522
        %s1525 = sor.u32 256, 64
        %1526 = vbcast.lane.b32.xlu0 %v1492, %s1525
        %v1527 = vpop.permute.xlu0 %1526
        %s1529 = sor.u32 256, 72
        %1530 = vbcast.lane.b32.xlu0 %v1492, %s1529
        %v1531 = vpop.permute.xlu0 %1530
        %s1533 = sor.u32 256, 80
        %1534 = vbcast.lane.b32.xlu0 %v1492, %s1533
        %v1535 = vpop.permute.xlu0 %1534
        %s1537 = sor.u32 256, 88
        %1538 = vbcast.lane.b32.xlu0 %v1492, %s1537
        %v1539 = vpop.permute.xlu0 %1538
        %s1541 = sor.u32 256, 96
        %1542 = vbcast.lane.b32.xlu0 %v1492, %s1541
        %v1543 = vpop.permute.xlu0 %1542
        %s1545 = sor.u32 256, 104
        %1546 = vbcast.lane.b32.xlu0 %v1492, %s1545
        %v1547 = vpop.permute.xlu0 %1546
        %s1549 = sor.u32 256, 112
        %1550 = vbcast.lane.b32.xlu0 %v1492, %s1549
        %v1551 = vpop.permute.xlu0 %1550
        %s1553 = sor.u32 256, 120
        %1554 = vbcast.lane.b32.xlu0 %v1492, %s1553
        %v1555 = vpop.permute.xlu0 %1554
        %v1572 = vadd.f32 %v1359, %v1495
        %v1573 = vadd.f32 %v1360, %v1499
        %v1574 = vadd.f32 %v1361, %v1503
        %v1575 = vadd.f32 %v1362, %v1507
        %v1576 = vadd.f32 %v1363, %v1511
        %v1577 = vadd.f32 %v1364, %v1515
        %v1578 = vadd.f32 %v1365, %v1519
        %v1579 = vadd.f32 %v1366, %v1523
        %v1580 = vadd.f32 %v1367, %v1527
        %v1581 = vadd.f32 %v1368, %v1531
        %v1582 = vadd.f32 %v1369, %v1535
        %v1583 = vadd.f32 %v1370, %v1539
        %v1584 = vadd.f32 %v1371, %v1543
        %v1585 = vadd.f32 %v1372, %v1547
        %v1586 = vadd.f32 %v1373, %v1551
        %v1587 = vadd.f32 %v1374, %v1555
        %v1588 = vadd.f32 %v1375, %v1495
        %v1589 = vadd.f32 %v1376, %v1499
        %v1590 = vadd.f32 %v1377, %v1503
        %v1591 = vadd.f32 %v1378, %v1507
        %v1592 = vadd.f32 %v1379, %v1511
        %v1593 = vadd.f32 %v1380, %v1515
        %v1594 = vadd.f32 %v1381, %v1519
        %v1595 = vadd.f32 %v1382, %v1523
        %v1596 = vadd.f32 %v1383, %v1527
        %v1597 = vadd.f32 %v1384, %v1531
        %v1598 = vadd.f32 %v1385, %v1535
        %v1599 = vadd.f32 %v1386, %v1539
        %v1600 = vadd.f32 %v1387, %v1543
        %v1601 = vadd.f32 %v1388, %v1547
        %v1602 = vadd.f32 %v1389, %v1551
        %v1603 = vadd.f32 %v1390, %v1555
        %v1604 = vadd.f32 %v1391, %v1495
        %v1605 = vadd.f32 %v1392, %v1499
        %v1606 = vadd.f32 %v1393, %v1503
        %v1607 = vadd.f32 %v1394, %v1507
        %v1608 = vadd.f32 %v1395, %v1511
        %v1609 = vadd.f32 %v1396, %v1515
        %v1610 = vadd.f32 %v1397, %v1519
        %v1611 = vadd.f32 %v1398, %v1523
        %v1612 = vadd.f32 %v1399, %v1527
        %v1613 = vadd.f32 %v1400, %v1531
        %v1614 = vadd.f32 %v1401, %v1535
        %v1615 = vadd.f32 %v1402, %v1539
        %v1616 = vadd.f32 %v1403, %v1543
        %v1617 = vadd.f32 %v1404, %v1547
        %v1618 = vadd.f32 %v1405, %v1551
        %v1619 = vadd.f32 %v1406, %v1555
        %v1620 = vadd.f32 %v1407, %v1495
        %v1621 = vadd.f32 %v1408, %v1499
        %v1622 = vadd.f32 %v1409, %v1503
        %v1623 = vadd.f32 %v1410, %v1507
        %v1624 = vadd.f32 %v1411, %v1511
        %v1625 = vadd.f32 %v1412, %v1515
        %v1626 = vadd.f32 %v1413, %v1519
        %v1627 = vadd.f32 %v1414, %v1523
        %v1628 = vadd.f32 %v1415, %v1527
        %v1629 = vadd.f32 %v1416, %v1531
        %v1630 = vadd.f32 %v1417, %v1535
        %v1631 = vadd.f32 %v1418, %v1539
        %v1632 = vadd.f32 %v1419, %v1543
        %v1633 = vadd.f32 %v1420, %v1547
        %v1634 = vadd.f32 %v1421, %v1551
        %v1635 = vadd.f32 %v1422, %v1555
        %v1636 = vadd.f32 %v1423, %v1495
        %v1637 = vadd.f32 %v1424, %v1499
        %v1638 = vadd.f32 %v1425, %v1503
        %v1639 = vadd.f32 %v1426, %v1507
        %v1640 = vadd.f32 %v1427, %v1511
        %v1641 = vadd.f32 %v1428, %v1515
        %v1642 = vadd.f32 %v1429, %v1519
        %v1643 = vadd.f32 %v1430, %v1523
        %v1644 = vadd.f32 %v1431, %v1527
        %v1645 = vadd.f32 %v1432, %v1531
        %v1646 = vadd.f32 %v1433, %v1535
        %v1647 = vadd.f32 %v1434, %v1539
        %v1648 = vadd.f32 %v1435, %v1543
        %v1649 = vadd.f32 %v1436, %v1547
        %v1650 = vadd.f32 %v1437, %v1551
        %v1651 = vadd.f32 %v1438, %v1555
        %v1652 = vadd.f32 %v1439, %v1495
        %v1653 = vadd.f32 %v1440, %v1499
        %v1654 = vadd.f32 %v1441, %v1503
        %v1655 = vadd.f32 %v1442, %v1507
        %v1656 = vadd.f32 %v1443, %v1511
        %v1657 = vadd.f32 %v1444, %v1515
        %v1658 = vadd.f32 %v1445, %v1519
        %v1659 = vadd.f32 %v1446, %v1523
        %v1660 = vadd.f32 %v1447, %v1527
        %v1661 = vadd.f32 %v1448, %v1531
        %v1662 = vadd.f32 %v1449, %v1535
        %v1663 = vadd.f32 %v1450, %v1539
        %v1664 = vadd.f32 %v1451, %v1543
        %v1665 = vadd.f32 %v1452, %v1547
        %v1666 = vadd.f32 %v1453, %v1551
        %v1667 = vadd.f32 %v1454, %v1555
        %v1668 = vadd.f32 %v1455, %v1495
        %v1669 = vadd.f32 %v1456, %v1499
        %v1670 = vadd.f32 %v1457, %v1503
        %v1671 = vadd.f32 %v1458, %v1507
        %v1672 = vadd.f32 %v1459, %v1511
        %v1673 = vadd.f32 %v1460, %v1515
        %v1674 = vadd.f32 %v1461, %v1519
        %v1675 = vadd.f32 %v1462, %v1523
        %v1676 = vadd.f32 %v1463, %v1527
        %v1677 = vadd.f32 %v1464, %v1531
        %v1678 = vadd.f32 %v1465, %v1535
        %v1679 = vadd.f32 %v1466, %v1539
        %v1680 = vadd.f32 %v1467, %v1543
        %v1681 = vadd.f32 %v1468, %v1547
        %v1682 = vadd.f32 %v1469, %v1551
        %v1683 = vadd.f32 %v1470, %v1555
        %v1684 = vadd.f32 %v1471, %v1495
        %v1685 = vadd.f32 %v1472, %v1499
        %v1686 = vadd.f32 %v1473, %v1503
        %v1687 = vadd.f32 %v1474, %v1507
        %v1688 = vadd.f32 %v1475, %v1511
        %v1689 = vadd.f32 %v1476, %v1515
        %v1690 = vadd.f32 %v1477, %v1519
        %v1691 = vadd.f32 %v1478, %v1523
        %v1692 = vadd.f32 %v1479, %v1527
        %v1693 = vadd.f32 %v1480, %v1531
        %v1694 = vadd.f32 %v1481, %v1535
        %v1695 = vadd.f32 %v1482, %v1539
        %v1696 = vadd.f32 %v1483, %v1543
        %v1697 = vadd.f32 %v1484, %v1547
        %v1698 = vadd.f32 %v1485, %v1551
        %v1699 = vadd.f32 %v1486, %v1555
        %1828 = vset.pattern.permute.xlu0 0
        %1829 = vperm.xlu0 %1828, %v1572
        %v1830 = vpop.permute.xlu0 %1829
        %1831 = vset.pattern.permute.xlu0 0
        %1832 = vperm.xlu0 %1831, %v1573
        %v1833 = vpop.permute.xlu0 %1832
        %1834 = vset.pattern.permute.xlu0 0
        %1835 = vperm.xlu0 %1834, %v1574
        %v1836 = vpop.permute.xlu0 %1835
        %1837 = vset.pattern.permute.xlu0 0
        %1838 = vperm.xlu0 %1837, %v1575
        %v1839 = vpop.permute.xlu0 %1838
        %1840 = vset.pattern.permute.xlu0 0
        %1841 = vperm.xlu0 %1840, %v1576
        %v1842 = vpop.permute.xlu0 %1841
        %1843 = vset.pattern.permute.xlu0 0
        %1844 = vperm.xlu0 %1843, %v1577
        %v1845 = vpop.permute.xlu0 %1844
        %1846 = vset.pattern.permute.xlu0 0
        %1847 = vperm.xlu0 %1846, %v1578
        %v1848 = vpop.permute.xlu0 %1847
        %1849 = vset.pattern.permute.xlu0 0
        %1850 = vperm.xlu0 %1849, %v1579
        %v1851 = vpop.permute.xlu0 %1850
        %1852 = vset.pattern.permute.xlu0 0
        %1853 = vperm.xlu0 %1852, %v1580
        %v1854 = vpop.permute.xlu0 %1853
        %1855 = vset.pattern.permute.xlu0 0
        %1856 = vperm.xlu0 %1855, %v1581
        %v1857 = vpop.permute.xlu0 %1856
        %1858 = vset.pattern.permute.xlu0 0
        %1859 = vperm.xlu0 %1858, %v1582
        %v1860 = vpop.permute.xlu0 %1859
        %1861 = vset.pattern.permute.xlu0 0
        %1862 = vperm.xlu0 %1861, %v1583
        %v1863 = vpop.permute.xlu0 %1862
        %1864 = vset.pattern.permute.xlu0 0
        %1865 = vperm.xlu0 %1864, %v1584
        %v1866 = vpop.permute.xlu0 %1865
        %1867 = vset.pattern.permute.xlu0 0
        %1868 = vperm.xlu0 %1867, %v1585
        %v1869 = vpop.permute.xlu0 %1868
        %1870 = vset.pattern.permute.xlu0 0
        %1871 = vperm.xlu0 %1870, %v1586
        %v1872 = vpop.permute.xlu0 %1871
        %1873 = vset.pattern.permute.xlu0 0
        %1874 = vperm.xlu0 %1873, %v1587
        %v1875 = vpop.permute.xlu0 %1874
        %1876 = vset.pattern.permute.xlu0 0
        %1877 = vperm.xlu0 %1876, %v1588
        %v1878 = vpop.permute.xlu0 %1877
        %1879 = vset.pattern.permute.xlu0 0
        %1880 = vperm.xlu0 %1879, %v1589
        %v1881 = vpop.permute.xlu0 %1880
        %1882 = vset.pattern.permute.xlu0 0
        %1883 = vperm.xlu0 %1882, %v1590
        %v1884 = vpop.permute.xlu0 %1883
        %1885 = vset.pattern.permute.xlu0 0
        %1886 = vperm.xlu0 %1885, %v1591
        %v1887 = vpop.permute.xlu0 %1886
        %1888 = vset.pattern.permute.xlu0 0
        %1889 = vperm.xlu0 %1888, %v1592
        %v1890 = vpop.permute.xlu0 %1889
        %1891 = vset.pattern.permute.xlu0 0
        %1892 = vperm.xlu0 %1891, %v1593
        %v1893 = vpop.permute.xlu0 %1892
        %1894 = vset.pattern.permute.xlu0 0
        %1895 = vperm.xlu0 %1894, %v1594
        %v1896 = vpop.permute.xlu0 %1895
        %1897 = vset.pattern.permute.xlu0 0
        %1898 = vperm.xlu0 %1897, %v1595
        %v1899 = vpop.permute.xlu0 %1898
        %1900 = vset.pattern.permute.xlu0 0
        %1901 = vperm.xlu0 %1900, %v1596
        %v1902 = vpop.permute.xlu0 %1901
        %1903 = vset.pattern.permute.xlu0 0
        %1904 = vperm.xlu0 %1903, %v1597
        %v1905 = vpop.permute.xlu0 %1904
        %1906 = vset.pattern.permute.xlu0 0
        %1907 = vperm.xlu0 %1906, %v1598
        %v1908 = vpop.permute.xlu0 %1907
        %1909 = vset.pattern.permute.xlu0 0
        %1910 = vperm.xlu0 %1909, %v1599
        %v1911 = vpop.permute.xlu0 %1910
        %1912 = vset.pattern.permute.xlu0 0
        %1913 = vperm.xlu0 %1912, %v1600
        %v1914 = vpop.permute.xlu0 %1913
        %1915 = vset.pattern.permute.xlu0 0
        %1916 = vperm.xlu0 %1915, %v1601
        %v1917 = vpop.permute.xlu0 %1916
        %1918 = vset.pattern.permute.xlu0 0
        %1919 = vperm.xlu0 %1918, %v1602
        %v1920 = vpop.permute.xlu0 %1919
        %1921 = vset.pattern.permute.xlu0 0
        %1922 = vperm.xlu0 %1921, %v1603
        %v1923 = vpop.permute.xlu0 %1922
        %1924 = vset.pattern.permute.xlu0 0
        %1925 = vperm.xlu0 %1924, %v1604
        %v1926 = vpop.permute.xlu0 %1925
        %1927 = vset.pattern.permute.xlu0 0
        %1928 = vperm.xlu0 %1927, %v1605
        %v1929 = vpop.permute.xlu0 %1928
        %1930 = vset.pattern.permute.xlu0 0
        %1931 = vperm.xlu0 %1930, %v1606
        %v1932 = vpop.permute.xlu0 %1931
        %1933 = vset.pattern.permute.xlu0 0
        %1934 = vperm.xlu0 %1933, %v1607
        %v1935 = vpop.permute.xlu0 %1934
        %1936 = vset.pattern.permute.xlu0 0
        %1937 = vperm.xlu0 %1936, %v1608
        %v1938 = vpop.permute.xlu0 %1937
        %1939 = vset.pattern.permute.xlu0 0
        %1940 = vperm.xlu0 %1939, %v1609
        %v1941 = vpop.permute.xlu0 %1940
        %1942 = vset.pattern.permute.xlu0 0
        %1943 = vperm.xlu0 %1942, %v1610
        %v1944 = vpop.permute.xlu0 %1943
        %1945 = vset.pattern.permute.xlu0 0
        %1946 = vperm.xlu0 %1945, %v1611
        %v1947 = vpop.permute.xlu0 %1946
        %1948 = vset.pattern.permute.xlu0 0
        %1949 = vperm.xlu0 %1948, %v1612
        %v1950 = vpop.permute.xlu0 %1949
        %1951 = vset.pattern.permute.xlu0 0
        %1952 = vperm.xlu0 %1951, %v1613
        %v1953 = vpop.permute.xlu0 %1952
        %1954 = vset.pattern.permute.xlu0 0
        %1955 = vperm.xlu0 %1954, %v1614
        %v1956 = vpop.permute.xlu0 %1955
        %1957 = vset.pattern.permute.xlu0 0
        %1958 = vperm.xlu0 %1957, %v1615
        %v1959 = vpop.permute.xlu0 %1958
        %1960 = vset.pattern.permute.xlu0 0
        %1961 = vperm.xlu0 %1960, %v1616
        %v1962 = vpop.permute.xlu0 %1961
        %1963 = vset.pattern.permute.xlu0 0
        %1964 = vperm.xlu0 %1963, %v1617
        %v1965 = vpop.permute.xlu0 %1964
        %1966 = vset.pattern.permute.xlu0 0
        %1967 = vperm.xlu0 %1966, %v1618
        %v1968 = vpop.permute.xlu0 %1967
        %1969 = vset.pattern.permute.xlu0 0
        %1970 = vperm.xlu0 %1969, %v1619
        %v1971 = vpop.permute.xlu0 %1970
        %1972 = vset.pattern.permute.xlu0 0
        %1973 = vperm.xlu0 %1972, %v1620
        %v1974 = vpop.permute.xlu0 %1973
        %1975 = vset.pattern.permute.xlu0 0
        %1976 = vperm.xlu0 %1975, %v1621
        %v1977 = vpop.permute.xlu0 %1976
        %1978 = vset.pattern.permute.xlu0 0
        %1979 = vperm.xlu0 %1978, %v1622
        %v1980 = vpop.permute.xlu0 %1979
        %1981 = vset.pattern.permute.xlu0 0
        %1982 = vperm.xlu0 %1981, %v1623
        %v1983 = vpop.permute.xlu0 %1982
        %1984 = vset.pattern.permute.xlu0 0
        %1985 = vperm.xlu0 %1984, %v1624
        %v1986 = vpop.permute.xlu0 %1985
        %1987 = vset.pattern.permute.xlu0 0
        %1988 = vperm.xlu0 %1987, %v1625
        %v1989 = vpop.permute.xlu0 %1988
        %1990 = vset.pattern.permute.xlu0 0
        %1991 = vperm.xlu0 %1990, %v1626
        %v1992 = vpop.permute.xlu0 %1991
        %1993 = vset.pattern.permute.xlu0 0
        %1994 = vperm.xlu0 %1993, %v1627
        %v1995 = vpop.permute.xlu0 %1994
        %1996 = vset.pattern.permute.xlu0 0
        %1997 = vperm.xlu0 %1996, %v1628
        %v1998 = vpop.permute.xlu0 %1997
        %1999 = vset.pattern.permute.xlu0 0
        %2000 = vperm.xlu0 %1999, %v1629
        %v2001 = vpop.permute.xlu0 %2000
        %2002 = vset.pattern.permute.xlu0 0
        %2003 = vperm.xlu0 %2002, %v1630
        %v2004 = vpop.permute.xlu0 %2003
        %2005 = vset.pattern.permute.xlu0 0
        %2006 = vperm.xlu0 %2005, %v1631
        %v2007 = vpop.permute.xlu0 %2006
        %2008 = vset.pattern.permute.xlu0 0
        %2009 = vperm.xlu0 %2008, %v1632
        %v2010 = vpop.permute.xlu0 %2009
        %2011 = vset.pattern.permute.xlu0 0
        %2012 = vperm.xlu0 %2011, %v1633
        %v2013 = vpop.permute.xlu0 %2012
        %2014 = vset.pattern.permute.xlu0 0
        %2015 = vperm.xlu0 %2014, %v1634
        %v2016 = vpop.permute.xlu0 %2015
        %2017 = vset.pattern.permute.xlu0 0
        %2018 = vperm.xlu0 %2017, %v1635
        %v2019 = vpop.permute.xlu0 %2018
        %2020 = vset.pattern.permute.xlu0 0
        %2021 = vperm.xlu0 %2020, %v1636
        %v2022 = vpop.permute.xlu0 %2021
        %2023 = vset.pattern.permute.xlu0 0
        %2024 = vperm.xlu0 %2023, %v1637
        %v2025 = vpop.permute.xlu0 %2024
        %2026 = vset.pattern.permute.xlu0 0
        %2027 = vperm.xlu0 %2026, %v1638
        %v2028 = vpop.permute.xlu0 %2027
        %2029 = vset.pattern.permute.xlu0 0
        %2030 = vperm.xlu0 %2029, %v1639
        %v2031 = vpop.permute.xlu0 %2030
        %2032 = vset.pattern.permute.xlu0 0
        %2033 = vperm.xlu0 %2032, %v1640
        %v2034 = vpop.permute.xlu0 %2033
        %2035 = vset.pattern.permute.xlu0 0
        %2036 = vperm.xlu0 %2035, %v1641
        %v2037 = vpop.permute.xlu0 %2036
        %2038 = vset.pattern.permute.xlu0 0
        %2039 = vperm.xlu0 %2038, %v1642
        %v2040 = vpop.permute.xlu0 %2039
        %2041 = vset.pattern.permute.xlu0 0
        %2042 = vperm.xlu0 %2041, %v1643
        %v2043 = vpop.permute.xlu0 %2042
        %2044 = vset.pattern.permute.xlu0 0
        %2045 = vperm.xlu0 %2044, %v1644
        %v2046 = vpop.permute.xlu0 %2045
        %2047 = vset.pattern.permute.xlu0 0
        %2048 = vperm.xlu0 %2047, %v1645
        %v2049 = vpop.permute.xlu0 %2048
        %2050 = vset.pattern.permute.xlu0 0
        %2051 = vperm.xlu0 %2050, %v1646
        %v2052 = vpop.permute.xlu0 %2051
        %2053 = vset.pattern.permute.xlu0 0
        %2054 = vperm.xlu0 %2053, %v1647
        %v2055 = vpop.permute.xlu0 %2054
        %2056 = vset.pattern.permute.xlu0 0
        %2057 = vperm.xlu0 %2056, %v1648
        %v2058 = vpop.permute.xlu0 %2057
        %2059 = vset.pattern.permute.xlu0 0
        %2060 = vperm.xlu0 %2059, %v1649
        %v2061 = vpop.permute.xlu0 %2060
        %2062 = vset.pattern.permute.xlu0 0
        %2063 = vperm.xlu0 %2062, %v1650
        %v2064 = vpop.permute.xlu0 %2063
        %2065 = vset.pattern.permute.xlu0 0
        %2066 = vperm.xlu0 %2065, %v1651
        %v2067 = vpop.permute.xlu0 %2066
        %2068 = vset.pattern.permute.xlu0 0
        %2069 = vperm.xlu0 %2068, %v1652
        %v2070 = vpop.permute.xlu0 %2069
        %2071 = vset.pattern.permute.xlu0 0
        %2072 = vperm.xlu0 %2071, %v1653
        %v2073 = vpop.permute.xlu0 %2072
        %2074 = vset.pattern.permute.xlu0 0
        %2075 = vperm.xlu0 %2074, %v1654
        %v2076 = vpop.permute.xlu0 %2075
        %2077 = vset.pattern.permute.xlu0 0
        %2078 = vperm.xlu0 %2077, %v1655
        %v2079 = vpop.permute.xlu0 %2078
        %2080 = vset.pattern.permute.xlu0 0
        %2081 = vperm.xlu0 %2080, %v1656
        %v2082 = vpop.permute.xlu0 %2081
        %2083 = vset.pattern.permute.xlu0 0
        %2084 = vperm.xlu0 %2083, %v1657
        %v2085 = vpop.permute.xlu0 %2084
        %2086 = vset.pattern.permute.xlu0 0
        %2087 = vperm.xlu0 %2086, %v1658
        %v2088 = vpop.permute.xlu0 %2087
        %2089 = vset.pattern.permute.xlu0 0
        %2090 = vperm.xlu0 %2089, %v1659
        %v2091 = vpop.permute.xlu0 %2090
        %2092 = vset.pattern.permute.xlu0 0
        %2093 = vperm.xlu0 %2092, %v1660
        %v2094 = vpop.permute.xlu0 %2093
        %2095 = vset.pattern.permute.xlu0 0
        %2096 = vperm.xlu0 %2095, %v1661
        %v2097 = vpop.permute.xlu0 %2096
        %2098 = vset.pattern.permute.xlu0 0
        %2099 = vperm.xlu0 %2098, %v1662
        %v2100 = vpop.permute.xlu0 %2099
        %2101 = vset.pattern.permute.xlu0 0
        %2102 = vperm.xlu0 %2101, %v1663
        %v2103 = vpop.permute.xlu0 %2102
        %2104 = vset.pattern.permute.xlu0 0
        %2105 = vperm.xlu0 %2104, %v1664
        %v2106 = vpop.permute.xlu0 %2105
        %2107 = vset.pattern.permute.xlu0 0
        %2108 = vperm.xlu0 %2107, %v1665
        %v2109 = vpop.permute.xlu0 %2108
        %2110 = vset.pattern.permute.xlu0 0
        %2111 = vperm.xlu0 %2110, %v1666
        %v2112 = vpop.permute.xlu0 %2111
        %2113 = vset.pattern.permute.xlu0 0
        %2114 = vperm.xlu0 %2113, %v1667
        %v2115 = vpop.permute.xlu0 %2114
        %2116 = vset.pattern.permute.xlu0 0
        %2117 = vperm.xlu0 %2116, %v1668
        %v2118 = vpop.permute.xlu0 %2117
        %2119 = vset.pattern.permute.xlu0 0
        %2120 = vperm.xlu0 %2119, %v1669
        %v2121 = vpop.permute.xlu0 %2120
        %2122 = vset.pattern.permute.xlu0 0
        %2123 = vperm.xlu0 %2122, %v1670
        %v2124 = vpop.permute.xlu0 %2123
        %2125 = vset.pattern.permute.xlu0 0
        %2126 = vperm.xlu0 %2125, %v1671
        %v2127 = vpop.permute.xlu0 %2126
        %2128 = vset.pattern.permute.xlu0 0
        %2129 = vperm.xlu0 %2128, %v1672
        %v2130 = vpop.permute.xlu0 %2129
        %2131 = vset.pattern.permute.xlu0 0
        %2132 = vperm.xlu0 %2131, %v1673
        %v2133 = vpop.permute.xlu0 %2132
        %2134 = vset.pattern.permute.xlu0 0
        %2135 = vperm.xlu0 %2134, %v1674
        %v2136 = vpop.permute.xlu0 %2135
        %2137 = vset.pattern.permute.xlu0 0
        %2138 = vperm.xlu0 %2137, %v1675
        %v2139 = vpop.permute.xlu0 %2138
        %2140 = vset.pattern.permute.xlu0 0
        %2141 = vperm.xlu0 %2140, %v1676
        %v2142 = vpop.permute.xlu0 %2141
        %2143 = vset.pattern.permute.xlu0 0
        %2144 = vperm.xlu0 %2143, %v1677
        %v2145 = vpop.permute.xlu0 %2144
        %2146 = vset.pattern.permute.xlu0 0
        %2147 = vperm.xlu0 %2146, %v1678
        %v2148 = vpop.permute.xlu0 %2147
        %2149 = vset.pattern.permute.xlu0 0
        %2150 = vperm.xlu0 %2149, %v1679
        %v2151 = vpop.permute.xlu0 %2150
        %2152 = vset.pattern.permute.xlu0 0
        %2153 = vperm.xlu0 %2152, %v1680
        %v2154 = vpop.permute.xlu0 %2153
        %2155 = vset.pattern.permute.xlu0 0
        %2156 = vperm.xlu0 %2155, %v1681
        %v2157 = vpop.permute.xlu0 %2156
        %2158 = vset.pattern.permute.xlu0 0
        %2159 = vperm.xlu0 %2158, %v1682
        %v2160 = vpop.permute.xlu0 %2159
        %2161 = vset.pattern.permute.xlu0 0
        %2162 = vperm.xlu0 %2161, %v1683
        %v2163 = vpop.permute.xlu0 %2162
        %2164 = vset.pattern.permute.xlu0 0
        %2165 = vperm.xlu0 %2164, %v1684
        %v2166 = vpop.permute.xlu0 %2165
        %2167 = vset.pattern.permute.xlu0 0
        %2168 = vperm.xlu0 %2167, %v1685
        %v2169 = vpop.permute.xlu0 %2168
        %2170 = vset.pattern.permute.xlu0 0
        %2171 = vperm.xlu0 %2170, %v1686
        %v2172 = vpop.permute.xlu0 %2171
        %2173 = vset.pattern.permute.xlu0 0
        %2174 = vperm.xlu0 %2173, %v1687
        %v2175 = vpop.permute.xlu0 %2174
        %2176 = vset.pattern.permute.xlu0 0
        %2177 = vperm.xlu0 %2176, %v1688
        %v2178 = vpop.permute.xlu0 %2177
        %2179 = vset.pattern.permute.xlu0 0
        %2180 = vperm.xlu0 %2179, %v1689
        %v2181 = vpop.permute.xlu0 %2180
        %2182 = vset.pattern.permute.xlu0 0
        %2183 = vperm.xlu0 %2182, %v1690
        %v2184 = vpop.permute.xlu0 %2183
        %2185 = vset.pattern.permute.xlu0 0
        %2186 = vperm.xlu0 %2185, %v1691
        %v2187 = vpop.permute.xlu0 %2186
        %2188 = vset.pattern.permute.xlu0 0
        %2189 = vperm.xlu0 %2188, %v1692
        %v2190 = vpop.permute.xlu0 %2189
        %2191 = vset.pattern.permute.xlu0 0
        %2192 = vperm.xlu0 %2191, %v1693
        %v2193 = vpop.permute.xlu0 %2192
        %2194 = vset.pattern.permute.xlu0 0
        %2195 = vperm.xlu0 %2194, %v1694
        %v2196 = vpop.permute.xlu0 %2195
        %2197 = vset.pattern.permute.xlu0 0
        %2198 = vperm.xlu0 %2197, %v1695
        %v2199 = vpop.permute.xlu0 %2198
        %2200 = vset.pattern.permute.xlu0 0
        %2201 = vperm.xlu0 %2200, %v1696
        %v2202 = vpop.permute.xlu0 %2201
        %2203 = vset.pattern.permute.xlu0 0
        %2204 = vperm.xlu0 %2203, %v1697
        %v2205 = vpop.permute.xlu0 %2204
        %2206 = vset.pattern.permute.xlu0 0
        %2207 = vperm.xlu0 %2206, %v1698
        %v2208 = vpop.permute.xlu0 %2207
        %2209 = vset.pattern.permute.xlu0 0
        %2210 = vperm.xlu0 %2209, %v1699
        %v2211 = vpop.permute.xlu0 %2210
        %v2212 = vlaneseq
        %v2213 = vand.u32 %v2212, 127
        %v2214 = vlaneseq
        %v2215 = vshrl.u32 %v2214, 7
        %v2216 = vsub.s32 %v2213, %v2215
        %v2217 = vrot.slane %v1830, %v2216
        %v2218 = vadd.s32 %v2213, 4294967288
        %v2219 = vlaneseq
        %v2220 = vshrl.u32 %v2219, 7
        %v2221 = vsub.s32 %v2218, %v2220
        %v2222 = vrot.slane %v1833, %v2221
        %vm2223 = vcmask 130112
        %v2224 = vsel %vm2223, %v2222, %v2217
        %v2225 = vadd.s32 %v2213, 4294967280
        %v2226 = vlaneseq
        %v2227 = vshrl.u32 %v2226, 7
        %v2228 = vsub.s32 %v2225, %v2227
        %v2229 = vrot.slane %v1836, %v2228
        %vm2230 = vcmask 195712
        %v2231 = vsel %vm2230, %v2229, %v2224
        %v2232 = vadd.s32 %v2213, 4294967272
        %v2233 = vlaneseq
        %v2234 = vshrl.u32 %v2233, 7
        %v2235 = vsub.s32 %v2232, %v2234
        %v2236 = vrot.slane %v1839, %v2235
        %vm2237 = vcmask 261312
        %v2238 = vsel %vm2237, %v2236, %v2231
        %v2239 = vadd.s32 %v2213, 4294967264
        %v2240 = vlaneseq
        %v2241 = vshrl.u32 %v2240, 7
        %v2242 = vsub.s32 %v2239, %v2241
        %v2243 = vrot.slane %v1842, %v2242
        %vm2244 = vcmask 326912
        %v2245 = vsel %vm2244, %v2243, %v2238
        %v2246 = vadd.s32 %v2213, 4294967256
        %v2247 = vlaneseq
        %v2248 = vshrl.u32 %v2247, 7
        %v2249 = vsub.s32 %v2246, %v2248
        %v2250 = vrot.slane %v1845, %v2249
        %vm2251 = vcmask 392512
        %v2252 = vsel %vm2251, %v2250, %v2245
        %v2253 = vadd.s32 %v2213, 4294967248
        %v2254 = vlaneseq
        %v2255 = vshrl.u32 %v2254, 7
        %v2256 = vsub.s32 %v2253, %v2255
        %v2257 = vrot.slane %v1848, %v2256
        %vm2258 = vcmask 458112
        %v2259 = vsel %vm2258, %v2257, %v2252
        %v2260 = vadd.s32 %v2213, 4294967240
        %v2261 = vlaneseq
        %v2262 = vshrl.u32 %v2261, 7
        %v2263 = vsub.s32 %v2260, %v2262
        %v2264 = vrot.slane %v1851, %v2263
        %vm2265 = vcmask 523712
        %v2266 = vsel %vm2265, %v2264, %v2259
        %v2267 = vadd.s32 %v2213, 4294967232
        %v2268 = vlaneseq
        %v2269 = vshrl.u32 %v2268, 7
        %v2270 = vsub.s32 %v2267, %v2269
        %v2271 = vrot.slane %v1854, %v2270
        %vm2272 = vcmask 589312
        %v2273 = vsel %vm2272, %v2271, %v2266
        %v2274 = vadd.s32 %v2213, 4294967224
        %v2275 = vlaneseq
        %v2276 = vshrl.u32 %v2275, 7
        %v2277 = vsub.s32 %v2274, %v2276
        %v2278 = vrot.slane %v1857, %v2277
        %vm2279 = vcmask 654912
        %v2280 = vsel %vm2279, %v2278, %v2273
        %v2281 = vadd.s32 %v2213, 4294967216
        %v2282 = vlaneseq
        %v2283 = vshrl.u32 %v2282, 7
        %v2284 = vsub.s32 %v2281, %v2283
        %v2285 = vrot.slane %v1860, %v2284
        %vm2286 = vcmask 720512
        %v2287 = vsel %vm2286, %v2285, %v2280
        %v2288 = vadd.s32 %v2213, 4294967208
        %v2289 = vlaneseq
        %v2290 = vshrl.u32 %v2289, 7
        %v2291 = vsub.s32 %v2288, %v2290
        %v2292 = vrot.slane %v1863, %v2291
        %vm2293 = vcmask 786112
        %v2294 = vsel %vm2293, %v2292, %v2287
        %v2295 = vadd.s32 %v2213, 4294967200
        %v2296 = vlaneseq
        %v2297 = vshrl.u32 %v2296, 7
        %v2298 = vsub.s32 %v2295, %v2297
        %v2299 = vrot.slane %v1866, %v2298
        %vm2300 = vcmask 851712
        %v2301 = vsel %vm2300, %v2299, %v2294
        %v2302 = vadd.s32 %v2213, 4294967192
        %v2303 = vlaneseq
        %v2304 = vshrl.u32 %v2303, 7
        %v2305 = vsub.s32 %v2302, %v2304
        %v2306 = vrot.slane %v1869, %v2305
        %vm2307 = vcmask 917312
        %v2308 = vsel %vm2307, %v2306, %v2301
        %v2309 = vadd.s32 %v2213, 4294967184
        %v2310 = vlaneseq
        %v2311 = vshrl.u32 %v2310, 7
        %v2312 = vsub.s32 %v2309, %v2311
        %v2313 = vrot.slane %v1872, %v2312
        %vm2314 = vcmask 982912
        %v2315 = vsel %vm2314, %v2313, %v2308
        %v2316 = vadd.s32 %v2213, 4294967176
        %v2317 = vlaneseq
        %v2318 = vshrl.u32 %v2317, 7
        %v2319 = vsub.s32 %v2316, %v2318
        %v2320 = vrot.slane %v1875, %v2319
        %vm2321 = vcmask 1048512
        %v2322 = vsel %vm2321, %v2320, %v2315
        %v2323 = vlaneseq
        %v2324 = vshrl.u32 %v2323, 7
        %v2325 = vsub.s32 %v2213, %v2324
        %v2326 = vrot.slane %v1878, %v2325
        %v2327 = vlaneseq
        %v2328 = vshrl.u32 %v2327, 7
        %v2329 = vsub.s32 %v2218, %v2328
        %v2330 = vrot.slane %v1881, %v2329
        %v2331 = vsel %vm2223, %v2330, %v2326
        %v2332 = vlaneseq
        %v2333 = vshrl.u32 %v2332, 7
        %v2334 = vsub.s32 %v2225, %v2333
        %v2335 = vrot.slane %v1884, %v2334
        %v2336 = vsel %vm2230, %v2335, %v2331
        %v2337 = vlaneseq
        %v2338 = vshrl.u32 %v2337, 7
        %v2339 = vsub.s32 %v2232, %v2338
        %v2340 = vrot.slane %v1887, %v2339
        %v2341 = vsel %vm2237, %v2340, %v2336
        %v2342 = vlaneseq
        %v2343 = vshrl.u32 %v2342, 7
        %v2344 = vsub.s32 %v2239, %v2343
        %v2345 = vrot.slane %v1890, %v2344
        %v2346 = vsel %vm2244, %v2345, %v2341
        %v2347 = vlaneseq
        %v2348 = vshrl.u32 %v2347, 7
        %v2349 = vsub.s32 %v2246, %v2348
        %v2350 = vrot.slane %v1893, %v2349
        %v2351 = vsel %vm2251, %v2350, %v2346
        %v2352 = vlaneseq
        %v2353 = vshrl.u32 %v2352, 7
        %v2354 = vsub.s32 %v2253, %v2353
        %v2355 = vrot.slane %v1896, %v2354
        %v2356 = vsel %vm2258, %v2355, %v2351
        %v2357 = vlaneseq
        %v2358 = vshrl.u32 %v2357, 7
        %v2359 = vsub.s32 %v2260, %v2358
        %v2360 = vrot.slane %v1899, %v2359
        %v2361 = vsel %vm2265, %v2360, %v2356
        %v2362 = vlaneseq
        %v2363 = vshrl.u32 %v2362, 7
        %v2364 = vsub.s32 %v2267, %v2363
        %v2365 = vrot.slane %v1902, %v2364
        %v2366 = vsel %vm2272, %v2365, %v2361
        %v2367 = vlaneseq
        %v2368 = vshrl.u32 %v2367, 7
        %v2369 = vsub.s32 %v2274, %v2368
        %v2370 = vrot.slane %v1905, %v2369
        %v2371 = vsel %vm2279, %v2370, %v2366
        %v2372 = vlaneseq
        %v2373 = vshrl.u32 %v2372, 7
        %v2374 = vsub.s32 %v2281, %v2373
        %v2375 = vrot.slane %v1908, %v2374
        %v2376 = vsel %vm2286, %v2375, %v2371
        %v2377 = vlaneseq
        %v2378 = vshrl.u32 %v2377, 7
        %v2379 = vsub.s32 %v2288, %v2378
        %v2380 = vrot.slane %v1911, %v2379
        %v2381 = vsel %vm2293, %v2380, %v2376
        %v2382 = vlaneseq
        %v2383 = vshrl.u32 %v2382, 7
        %v2384 = vsub.s32 %v2295, %v2383
        %v2385 = vrot.slane %v1914, %v2384
        %v2386 = vsel %vm2300, %v2385, %v2381
        %v2387 = vlaneseq
        %v2388 = vshrl.u32 %v2387, 7
        %v2389 = vsub.s32 %v2302, %v2388
        %v2390 = vrot.slane %v1917, %v2389
        %v2391 = vsel %vm2307, %v2390, %v2386
        %v2392 = vlaneseq
        %v2393 = vshrl.u32 %v2392, 7
        %v2394 = vsub.s32 %v2309, %v2393
        %v2395 = vrot.slane %v1920, %v2394
        %v2396 = vsel %vm2314, %v2395, %v2391
        %v2397 = vlaneseq
        %v2398 = vshrl.u32 %v2397, 7
        %v2399 = vsub.s32 %v2316, %v2398
        %v2400 = vrot.slane %v1923, %v2399
        %v2401 = vsel %vm2321, %v2400, %v2396
        %v2402 = vlaneseq
        %v2403 = vshrl.u32 %v2402, 7
        %v2404 = vsub.s32 %v2213, %v2403
        %v2405 = vrot.slane %v1926, %v2404
        %v2406 = vlaneseq
        %v2407 = vshrl.u32 %v2406, 7
        %v2408 = vsub.s32 %v2218, %v2407
        %v2409 = vrot.slane %v1929, %v2408
        %v2410 = vsel %vm2223, %v2409, %v2405
        %v2411 = vlaneseq
        %v2412 = vshrl.u32 %v2411, 7
        %v2413 = vsub.s32 %v2225, %v2412
        %v2414 = vrot.slane %v1932, %v2413
        %v2415 = vsel %vm2230, %v2414, %v2410
        %v2416 = vlaneseq
        %v2417 = vshrl.u32 %v2416, 7
        %v2418 = vsub.s32 %v2232, %v2417
        %v2419 = vrot.slane %v1935, %v2418
        %v2420 = vsel %vm2237, %v2419, %v2415
        %v2421 = vlaneseq
        %v2422 = vshrl.u32 %v2421, 7
        %v2423 = vsub.s32 %v2239, %v2422
        %v2424 = vrot.slane %v1938, %v2423
        %v2425 = vsel %vm2244, %v2424, %v2420
        %v2426 = vlaneseq
        %v2427 = vshrl.u32 %v2426, 7
        %v2428 = vsub.s32 %v2246, %v2427
        %v2429 = vrot.slane %v1941, %v2428
        %v2430 = vsel %vm2251, %v2429, %v2425
        %v2431 = vlaneseq
        %v2432 = vshrl.u32 %v2431, 7
        %v2433 = vsub.s32 %v2253, %v2432
        %v2434 = vrot.slane %v1944, %v2433
        %v2435 = vsel %vm2258, %v2434, %v2430
        %v2436 = vlaneseq
        %v2437 = vshrl.u32 %v2436, 7
        %v2438 = vsub.s32 %v2260, %v2437
        %v2439 = vrot.slane %v1947, %v2438
        %v2440 = vsel %vm2265, %v2439, %v2435
        %v2441 = vlaneseq
        %v2442 = vshrl.u32 %v2441, 7
        %v2443 = vsub.s32 %v2267, %v2442
        %v2444 = vrot.slane %v1950, %v2443
        %v2445 = vsel %vm2272, %v2444, %v2440
        %v2446 = vlaneseq
        %v2447 = vshrl.u32 %v2446, 7
        %v2448 = vsub.s32 %v2274, %v2447
        %v2449 = vrot.slane %v1953, %v2448
        %v2450 = vsel %vm2279, %v2449, %v2445
        %v2451 = vlaneseq
        %v2452 = vshrl.u32 %v2451, 7
        %v2453 = vsub.s32 %v2281, %v2452
        %v2454 = vrot.slane %v1956, %v2453
        %v2455 = vsel %vm2286, %v2454, %v2450
        %v2456 = vlaneseq
        %v2457 = vshrl.u32 %v2456, 7
        %v2458 = vsub.s32 %v2288, %v2457
        %v2459 = vrot.slane %v1959, %v2458
        %v2460 = vsel %vm2293, %v2459, %v2455
        %v2461 = vlaneseq
        %v2462 = vshrl.u32 %v2461, 7
        %v2463 = vsub.s32 %v2295, %v2462
        %v2464 = vrot.slane %v1962, %v2463
        %v2465 = vsel %vm2300, %v2464, %v2460
        %v2466 = vlaneseq
        %v2467 = vshrl.u32 %v2466, 7
        %v2468 = vsub.s32 %v2302, %v2467
        %v2469 = vrot.slane %v1965, %v2468
        %v2470 = vsel %vm2307, %v2469, %v2465
        %v2471 = vlaneseq
        %v2472 = vshrl.u32 %v2471, 7
        %v2473 = vsub.s32 %v2309, %v2472
        %v2474 = vrot.slane %v1968, %v2473
        %v2475 = vsel %vm2314, %v2474, %v2470
        %v2476 = vlaneseq
        %v2477 = vshrl.u32 %v2476, 7
        %v2478 = vsub.s32 %v2316, %v2477
        %v2479 = vrot.slane %v1971, %v2478
        %v2480 = vsel %vm2321, %v2479, %v2475
        %v2481 = vlaneseq
        %v2482 = vshrl.u32 %v2481, 7
        %v2483 = vsub.s32 %v2213, %v2482
        %v2484 = vrot.slane %v1974, %v2483
        %v2485 = vlaneseq
        %v2486 = vshrl.u32 %v2485, 7
        %v2487 = vsub.s32 %v2218, %v2486
        %v2488 = vrot.slane %v1977, %v2487
        %v2489 = vsel %vm2223, %v2488, %v2484
        %v2490 = vlaneseq
        %v2491 = vshrl.u32 %v2490, 7
        %v2492 = vsub.s32 %v2225, %v2491
        %v2493 = vrot.slane %v1980, %v2492
        %v2494 = vsel %vm2230, %v2493, %v2489
        %v2495 = vlaneseq
        %v2496 = vshrl.u32 %v2495, 7
        %v2497 = vsub.s32 %v2232, %v2496
        %v2498 = vrot.slane %v1983, %v2497
        %v2499 = vsel %vm2237, %v2498, %v2494
        %v2500 = vlaneseq
        %v2501 = vshrl.u32 %v2500, 7
        %v2502 = vsub.s32 %v2239, %v2501
        %v2503 = vrot.slane %v1986, %v2502
        %v2504 = vsel %vm2244, %v2503, %v2499
        %v2505 = vlaneseq
        %v2506 = vshrl.u32 %v2505, 7
        %v2507 = vsub.s32 %v2246, %v2506
        %v2508 = vrot.slane %v1989, %v2507
        %v2509 = vsel %vm2251, %v2508, %v2504
        %v2510 = vlaneseq
        %v2511 = vshrl.u32 %v2510, 7
        %v2512 = vsub.s32 %v2253, %v2511
        %v2513 = vrot.slane %v1992, %v2512
        %v2514 = vsel %vm2258, %v2513, %v2509
        %v2515 = vlaneseq
        %v2516 = vshrl.u32 %v2515, 7
        %v2517 = vsub.s32 %v2260, %v2516
        %v2518 = vrot.slane %v1995, %v2517
        %v2519 = vsel %vm2265, %v2518, %v2514
        %v2520 = vlaneseq
        %v2521 = vshrl.u32 %v2520, 7
        %v2522 = vsub.s32 %v2267, %v2521
        %v2523 = vrot.slane %v1998, %v2522
        %v2524 = vsel %vm2272, %v2523, %v2519
        %v2525 = vlaneseq
        %v2526 = vshrl.u32 %v2525, 7
        %v2527 = vsub.s32 %v2274, %v2526
        %v2528 = vrot.slane %v2001, %v2527
        %v2529 = vsel %vm2279, %v2528, %v2524
        %v2530 = vlaneseq
        %v2531 = vshrl.u32 %v2530, 7
        %v2532 = vsub.s32 %v2281, %v2531
        %v2533 = vrot.slane %v2004, %v2532
        %v2534 = vsel %vm2286, %v2533, %v2529
        %v2535 = vlaneseq
        %v2536 = vshrl.u32 %v2535, 7
        %v2537 = vsub.s32 %v2288, %v2536
        %v2538 = vrot.slane %v2007, %v2537
        %v2539 = vsel %vm2293, %v2538, %v2534
        %v2540 = vlaneseq
        %v2541 = vshrl.u32 %v2540, 7
        %v2542 = vsub.s32 %v2295, %v2541
        %v2543 = vrot.slane %v2010, %v2542
        %v2544 = vsel %vm2300, %v2543, %v2539
        %v2545 = vlaneseq
        %v2546 = vshrl.u32 %v2545, 7
        %v2547 = vsub.s32 %v2302, %v2546
        %v2548 = vrot.slane %v2013, %v2547
        %v2549 = vsel %vm2307, %v2548, %v2544
        %v2550 = vlaneseq
        %v2551 = vshrl.u32 %v2550, 7
        %v2552 = vsub.s32 %v2309, %v2551
        %v2553 = vrot.slane %v2016, %v2552
        %v2554 = vsel %vm2314, %v2553, %v2549
        %v2555 = vlaneseq
        %v2556 = vshrl.u32 %v2555, 7
        %v2557 = vsub.s32 %v2316, %v2556
        %v2558 = vrot.slane %v2019, %v2557
        %v2559 = vsel %vm2321, %v2558, %v2554
        %v2560 = vlaneseq
        %v2561 = vshrl.u32 %v2560, 7
        %v2562 = vsub.s32 %v2213, %v2561
        %v2563 = vrot.slane %v2022, %v2562
        %v2564 = vlaneseq
        %v2565 = vshrl.u32 %v2564, 7
        %v2566 = vsub.s32 %v2218, %v2565
        %v2567 = vrot.slane %v2025, %v2566
        %v2568 = vsel %vm2223, %v2567, %v2563
        %v2569 = vlaneseq
        %v2570 = vshrl.u32 %v2569, 7
        %v2571 = vsub.s32 %v2225, %v2570
        %v2572 = vrot.slane %v2028, %v2571
        %v2573 = vsel %vm2230, %v2572, %v2568
        %v2574 = vlaneseq
        %v2575 = vshrl.u32 %v2574, 7
        %v2576 = vsub.s32 %v2232, %v2575
        %v2577 = vrot.slane %v2031, %v2576
        %v2578 = vsel %vm2237, %v2577, %v2573
        %v2579 = vlaneseq
        %v2580 = vshrl.u32 %v2579, 7
        %v2581 = vsub.s32 %v2239, %v2580
        %v2582 = vrot.slane %v2034, %v2581
        %v2583 = vsel %vm2244, %v2582, %v2578
        %v2584 = vlaneseq
        %v2585 = vshrl.u32 %v2584, 7
        %v2586 = vsub.s32 %v2246, %v2585
        %v2587 = vrot.slane %v2037, %v2586
        %v2588 = vsel %vm2251, %v2587, %v2583
        %v2589 = vlaneseq
        %v2590 = vshrl.u32 %v2589, 7
        %v2591 = vsub.s32 %v2253, %v2590
        %v2592 = vrot.slane %v2040, %v2591
        %v2593 = vsel %vm2258, %v2592, %v2588
        %v2594 = vlaneseq
        %v2595 = vshrl.u32 %v2594, 7
        %v2596 = vsub.s32 %v2260, %v2595
        %v2597 = vrot.slane %v2043, %v2596
        %v2598 = vsel %vm2265, %v2597, %v2593
        %v2599 = vlaneseq
        %v2600 = vshrl.u32 %v2599, 7
        %v2601 = vsub.s32 %v2267, %v2600
        %v2602 = vrot.slane %v2046, %v2601
        %v2603 = vsel %vm2272, %v2602, %v2598
        %v2604 = vlaneseq
        %v2605 = vshrl.u32 %v2604, 7
        %v2606 = vsub.s32 %v2274, %v2605
        %v2607 = vrot.slane %v2049, %v2606
        %v2608 = vsel %vm2279, %v2607, %v2603
        %v2609 = vlaneseq
        %v2610 = vshrl.u32 %v2609, 7
        %v2611 = vsub.s32 %v2281, %v2610
        %v2612 = vrot.slane %v2052, %v2611
        %v2613 = vsel %vm2286, %v2612, %v2608
        %v2614 = vlaneseq
        %v2615 = vshrl.u32 %v2614, 7
        %v2616 = vsub.s32 %v2288, %v2615
        %v2617 = vrot.slane %v2055, %v2616
        %v2618 = vsel %vm2293, %v2617, %v2613
        %v2619 = vlaneseq
        %v2620 = vshrl.u32 %v2619, 7
        %v2621 = vsub.s32 %v2295, %v2620
        %v2622 = vrot.slane %v2058, %v2621
        %v2623 = vsel %vm2300, %v2622, %v2618
        %v2624 = vlaneseq
        %v2625 = vshrl.u32 %v2624, 7
        %v2626 = vsub.s32 %v2302, %v2625
        %v2627 = vrot.slane %v2061, %v2626
        %v2628 = vsel %vm2307, %v2627, %v2623
        %v2629 = vlaneseq
        %v2630 = vshrl.u32 %v2629, 7
        %v2631 = vsub.s32 %v2309, %v2630
        %v2632 = vrot.slane %v2064, %v2631
        %v2633 = vsel %vm2314, %v2632, %v2628
        %v2634 = vlaneseq
        %v2635 = vshrl.u32 %v2634, 7
        %v2636 = vsub.s32 %v2316, %v2635
        %v2637 = vrot.slane %v2067, %v2636
        %v2638 = vsel %vm2321, %v2637, %v2633
        %v2639 = vlaneseq
        %v2640 = vshrl.u32 %v2639, 7
        %v2641 = vsub.s32 %v2213, %v2640
        %v2642 = vrot.slane %v2070, %v2641
        %v2643 = vlaneseq
        %v2644 = vshrl.u32 %v2643, 7
        %v2645 = vsub.s32 %v2218, %v2644
        %v2646 = vrot.slane %v2073, %v2645
        %v2647 = vsel %vm2223, %v2646, %v2642
        %v2648 = vlaneseq
        %v2649 = vshrl.u32 %v2648, 7
        %v2650 = vsub.s32 %v2225, %v2649
        %v2651 = vrot.slane %v2076, %v2650
        %v2652 = vsel %vm2230, %v2651, %v2647
        %v2653 = vlaneseq
        %v2654 = vshrl.u32 %v2653, 7
        %v2655 = vsub.s32 %v2232, %v2654
        %v2656 = vrot.slane %v2079, %v2655
        %v2657 = vsel %vm2237, %v2656, %v2652
        %v2658 = vlaneseq
        %v2659 = vshrl.u32 %v2658, 7
        %v2660 = vsub.s32 %v2239, %v2659
        %v2661 = vrot.slane %v2082, %v2660
        %v2662 = vsel %vm2244, %v2661, %v2657
        %v2663 = vlaneseq
        %v2664 = vshrl.u32 %v2663, 7
        %v2665 = vsub.s32 %v2246, %v2664
        %v2666 = vrot.slane %v2085, %v2665
        %v2667 = vsel %vm2251, %v2666, %v2662
        %v2668 = vlaneseq
        %v2669 = vshrl.u32 %v2668, 7
        %v2670 = vsub.s32 %v2253, %v2669
        %v2671 = vrot.slane %v2088, %v2670
        %v2672 = vsel %vm2258, %v2671, %v2667
        %v2673 = vlaneseq
        %v2674 = vshrl.u32 %v2673, 7
        %v2675 = vsub.s32 %v2260, %v2674
        %v2676 = vrot.slane %v2091, %v2675
        %v2677 = vsel %vm2265, %v2676, %v2672
        %v2678 = vlaneseq
        %v2679 = vshrl.u32 %v2678, 7
        %v2680 = vsub.s32 %v2267, %v2679
        %v2681 = vrot.slane %v2094, %v2680
        %v2682 = vsel %vm2272, %v2681, %v2677
        %v2683 = vlaneseq
        %v2684 = vshrl.u32 %v2683, 7
        %v2685 = vsub.s32 %v2274, %v2684
        %v2686 = vrot.slane %v2097, %v2685
        %v2687 = vsel %vm2279, %v2686, %v2682
        %v2688 = vlaneseq
        %v2689 = vshrl.u32 %v2688, 7
        %v2690 = vsub.s32 %v2281, %v2689
        %v2691 = vrot.slane %v2100, %v2690
        %v2692 = vsel %vm2286, %v2691, %v2687
        %v2693 = vlaneseq
        %v2694 = vshrl.u32 %v2693, 7
        %v2695 = vsub.s32 %v2288, %v2694
        %v2696 = vrot.slane %v2103, %v2695
        %v2697 = vsel %vm2293, %v2696, %v2692
        %v2698 = vlaneseq
        %v2699 = vshrl.u32 %v2698, 7
        %v2700 = vsub.s32 %v2295, %v2699
        %v2701 = vrot.slane %v2106, %v2700
        %v2702 = vsel %vm2300, %v2701, %v2697
        %v2703 = vlaneseq
        %v2704 = vshrl.u32 %v2703, 7
        %v2705 = vsub.s32 %v2302, %v2704
        %v2706 = vrot.slane %v2109, %v2705
        %v2707 = vsel %vm2307, %v2706, %v2702
        %v2708 = vlaneseq
        %v2709 = vshrl.u32 %v2708, 7
        %v2710 = vsub.s32 %v2309, %v2709
        %v2711 = vrot.slane %v2112, %v2710
        %v2712 = vsel %vm2314, %v2711, %v2707
        %v2713 = vlaneseq
        %v2714 = vshrl.u32 %v2713, 7
        %v2715 = vsub.s32 %v2316, %v2714
        %v2716 = vrot.slane %v2115, %v2715
        %v2717 = vsel %vm2321, %v2716, %v2712
        %v2718 = vlaneseq
        %v2719 = vshrl.u32 %v2718, 7
        %v2720 = vsub.s32 %v2213, %v2719
        %v2721 = vrot.slane %v2118, %v2720
        %v2722 = vlaneseq
        %v2723 = vshrl.u32 %v2722, 7
        %v2724 = vsub.s32 %v2218, %v2723
        %v2725 = vrot.slane %v2121, %v2724
        %v2726 = vsel %vm2223, %v2725, %v2721
        %v2727 = vlaneseq
        %v2728 = vshrl.u32 %v2727, 7
        %v2729 = vsub.s32 %v2225, %v2728
        %v2730 = vrot.slane %v2124, %v2729
        %v2731 = vsel %vm2230, %v2730, %v2726
        %v2732 = vlaneseq
        %v2733 = vshrl.u32 %v2732, 7
        %v2734 = vsub.s32 %v2232, %v2733
        %v2735 = vrot.slane %v2127, %v2734
        %v2736 = vsel %vm2237, %v2735, %v2731
        %v2737 = vlaneseq
        %v2738 = vshrl.u32 %v2737, 7
        %v2739 = vsub.s32 %v2239, %v2738
        %v2740 = vrot.slane %v2130, %v2739
        %v2741 = vsel %vm2244, %v2740, %v2736
        %v2742 = vlaneseq
        %v2743 = vshrl.u32 %v2742, 7
        %v2744 = vsub.s32 %v2246, %v2743
        %v2745 = vrot.slane %v2133, %v2744
        %v2746 = vsel %vm2251, %v2745, %v2741
        %v2747 = vlaneseq
        %v2748 = vshrl.u32 %v2747, 7
        %v2749 = vsub.s32 %v2253, %v2748
        %v2750 = vrot.slane %v2136, %v2749
        %v2751 = vsel %vm2258, %v2750, %v2746
        %v2752 = vlaneseq
        %v2753 = vshrl.u32 %v2752, 7
        %v2754 = vsub.s32 %v2260, %v2753
        %v2755 = vrot.slane %v2139, %v2754
        %v2756 = vsel %vm2265, %v2755, %v2751
        %v2757 = vlaneseq
        %v2758 = vshrl.u32 %v2757, 7
        %v2759 = vsub.s32 %v2267, %v2758
        %v2760 = vrot.slane %v2142, %v2759
        %v2761 = vsel %vm2272, %v2760, %v2756
        %v2762 = vlaneseq
        %v2763 = vshrl.u32 %v2762, 7
        %v2764 = vsub.s32 %v2274, %v2763
        %v2765 = vrot.slane %v2145, %v2764
        %v2766 = vsel %vm2279, %v2765, %v2761
        %v2767 = vlaneseq
        %v2768 = vshrl.u32 %v2767, 7
        %v2769 = vsub.s32 %v2281, %v2768
        %v2770 = vrot.slane %v2148, %v2769
        %v2771 = vsel %vm2286, %v2770, %v2766
        %v2772 = vlaneseq
        %v2773 = vshrl.u32 %v2772, 7
        %v2774 = vsub.s32 %v2288, %v2773
        %v2775 = vrot.slane %v2151, %v2774
        %v2776 = vsel %vm2293, %v2775, %v2771
        %v2777 = vlaneseq
        %v2778 = vshrl.u32 %v2777, 7
        %v2779 = vsub.s32 %v2295, %v2778
        %v2780 = vrot.slane %v2154, %v2779
        %v2781 = vsel %vm2300, %v2780, %v2776
        %v2782 = vlaneseq
        %v2783 = vshrl.u32 %v2782, 7
        %v2784 = vsub.s32 %v2302, %v2783
        %v2785 = vrot.slane %v2157, %v2784
        %v2786 = vsel %vm2307, %v2785, %v2781
        %v2787 = vlaneseq
        %v2788 = vshrl.u32 %v2787, 7
        %v2789 = vsub.s32 %v2309, %v2788
        %v2790 = vrot.slane %v2160, %v2789
        %v2791 = vsel %vm2314, %v2790, %v2786
        %v2792 = vlaneseq
        %v2793 = vshrl.u32 %v2792, 7
        %v2794 = vsub.s32 %v2316, %v2793
        %v2795 = vrot.slane %v2163, %v2794
        %v2796 = vsel %vm2321, %v2795, %v2791
        %v2797 = vlaneseq
        %v2798 = vshrl.u32 %v2797, 7
        %v2799 = vsub.s32 %v2213, %v2798
        %v2800 = vrot.slane %v2166, %v2799
        %v2801 = vlaneseq
        %v2802 = vshrl.u32 %v2801, 7
        %v2803 = vsub.s32 %v2218, %v2802
        %v2804 = vrot.slane %v2169, %v2803
        %v2805 = vsel %vm2223, %v2804, %v2800
        %v2806 = vlaneseq
        %v2807 = vshrl.u32 %v2806, 7
        %v2808 = vsub.s32 %v2225, %v2807
        %v2809 = vrot.slane %v2172, %v2808
        %v2810 = vsel %vm2230, %v2809, %v2805
        %v2811 = vlaneseq
        %v2812 = vshrl.u32 %v2811, 7
        %v2813 = vsub.s32 %v2232, %v2812
        %v2814 = vrot.slane %v2175, %v2813
        %v2815 = vsel %vm2237, %v2814, %v2810
        %v2816 = vlaneseq
        %v2817 = vshrl.u32 %v2816, 7
        %v2818 = vsub.s32 %v2239, %v2817
        %v2819 = vrot.slane %v2178, %v2818
        %v2820 = vsel %vm2244, %v2819, %v2815
        %v2821 = vlaneseq
        %v2822 = vshrl.u32 %v2821, 7
        %v2823 = vsub.s32 %v2246, %v2822
        %v2824 = vrot.slane %v2181, %v2823
        %v2825 = vsel %vm2251, %v2824, %v2820
        %v2826 = vlaneseq
        %v2827 = vshrl.u32 %v2826, 7
        %v2828 = vsub.s32 %v2253, %v2827
        %v2829 = vrot.slane %v2184, %v2828
        %v2830 = vsel %vm2258, %v2829, %v2825
        %v2831 = vlaneseq
        %v2832 = vshrl.u32 %v2831, 7
        %v2833 = vsub.s32 %v2260, %v2832
        %v2834 = vrot.slane %v2187, %v2833
        %v2835 = vsel %vm2265, %v2834, %v2830
        %v2836 = vlaneseq
        %v2837 = vshrl.u32 %v2836, 7
        %v2838 = vsub.s32 %v2267, %v2837
        %v2839 = vrot.slane %v2190, %v2838
        %v2840 = vsel %vm2272, %v2839, %v2835
        %v2841 = vlaneseq
        %v2842 = vshrl.u32 %v2841, 7
        %v2843 = vsub.s32 %v2274, %v2842
        %v2844 = vrot.slane %v2193, %v2843
        %v2845 = vsel %vm2279, %v2844, %v2840
        %v2846 = vlaneseq
        %v2847 = vshrl.u32 %v2846, 7
        %v2848 = vsub.s32 %v2281, %v2847
        %v2849 = vrot.slane %v2196, %v2848
        %v2850 = vsel %vm2286, %v2849, %v2845
        %v2851 = vlaneseq
        %v2852 = vshrl.u32 %v2851, 7
        %v2853 = vsub.s32 %v2288, %v2852
        %v2854 = vrot.slane %v2199, %v2853
        %v2855 = vsel %vm2293, %v2854, %v2850
        %v2856 = vlaneseq
        %v2857 = vshrl.u32 %v2856, 7
        %v2858 = vsub.s32 %v2295, %v2857
        %v2859 = vrot.slane %v2202, %v2858
        %v2860 = vsel %vm2300, %v2859, %v2855
        %v2861 = vlaneseq
        %v2862 = vshrl.u32 %v2861, 7
        %v2863 = vsub.s32 %v2302, %v2862
        %v2864 = vrot.slane %v2205, %v2863
        %v2865 = vsel %vm2307, %v2864, %v2860
        %v2866 = vlaneseq
        %v2867 = vshrl.u32 %v2866, 7
        %v2868 = vsub.s32 %v2309, %v2867
        %v2869 = vrot.slane %v2208, %v2868
        %v2870 = vsel %vm2314, %v2869, %v2865
        %v2871 = vlaneseq
        %v2872 = vshrl.u32 %v2871, 7
        %v2873 = vsub.s32 %v2316, %v2872
        %v2874 = vrot.slane %v2211, %v2873
        %v2875 = vsel %vm2321, %v2874, %v2870
        %vm2876 = vcmask 1041409
        %v2877 = vsel %vm2876, %v2401, %v2322
        %vm2878 = vcmask 1042434
        %v2879 = vsel %vm2878, %v2480, %v2877
        %vm2880 = vcmask 1043459
        %v2881 = vsel %vm2880, %v2559, %v2879
        %vm2882 = vcmask 1044484
        %v2883 = vsel %vm2882, %v2638, %v2881
        %vm2884 = vcmask 1045509
        %v2885 = vsel %vm2884, %v2717, %v2883
        %vm2886 = vcmask 1046534
        %v2887 = vsel %vm2886, %v2796, %v2885
        %vm2888 = vcmask 1047559
        %v2889 = vsel %vm2888, %v2875, %v2887
        %2891 = vst [vmem:[%s752] sm:$0xff] %v2889
        %s2892 = sand.u32 %s119, 1
        %s2893 = scalar_lea.sflag [#allocation4], %s2892
        %s2894 = sand.u32 %s119, 1
        %s2895 = smul.addr %s2894, 8
        %s2896 = scalar_lea.vmem [#allocation3], %s2895
        // Predicated region
        $region71: #{tpu_custom_call.1} parent=65 // pred_check
          %p2897 = pneg %p129
        $region72: #{tpu_custom_call.1} parent=65 // pred_check_branch
          %2899 = sbr.rel (%p2897) target = $region74
        $region73: #{tpu_custom_call.1} parent=65 // pred_region
          %s2901 = ssub.s32 128, 128
          %2902 = vsyncadd %s2893, %s2901
          %s2903 = smul.addr %s22, 2
          %s2904 = sadd.s32 %s21, %s2903
          %s2905 = smul.addr %s2904, 128
          %s2906 = scalar_lea.hbm %s3, %s2905
          %s2908 = sshll.u32 %s2896, 4
          %s2909 = int_to_ptr.vmem [resolvable:$true] %s2908
          %2911 = dma.vmem_to_hbm [thread:$0]  %s2909, 128, %s2906, %s2893
        $region74: #{tpu_custom_call.1} parent=65 // pred_fallthru
          _
      $region66: #{tpu_custom_call.1} parent=5 // pred_fallthru
        _
      %p2912 = scmp.le.s32.totalorder 2, %s12
      // Predicated region
      $region75: #{tpu_custom_call.1} parent=5 // pred_check
        %p2913 = pneg %p2912
      $region76: #{tpu_custom_call.1} parent=5 // pred_check_branch
        %2915 = sbr.rel (%p2913) target = $region78
      $region77: #{tpu_custom_call.1} parent=5 // pred_region
        %s2916 = ssub.s32 %s12, 2
        // Predicated region
        $region79: #{tpu_custom_call.1} parent=77 // pred_check
          %p2917 = pneg %p135
        $region80: #{tpu_custom_call.1} parent=77 // pred_check_branch
          %2919 = sbr.rel (%p2917) target = $region82
        $region81: #{tpu_custom_call.1} parent=77 // pred_region
          %s2920 = sand.u32 %s120, 1
          %s2921 = scalar_lea.sflag [#allocation4], %s2920
          %s2922 = sand.u32 %s120, 1
          %s2923 = smul.addr %s2922, 8
          %s2924 = scalar_lea.vmem [#allocation3], %s2923
          %2925 = dma.done %s2921, 128
        $region82: #{tpu_custom_call.1} parent=77 // pred_fallthru
          _
      $region78: #{tpu_custom_call.1} parent=5 // pred_fallthru
        _
    $region6: #{tpu_custom_call.1} parent=1 // loop_footer
      %s16 = sadd.s32 1, %s12
    $region7: #{tpu_custom_call.1} parent=1 // loop_footer_branch
      %11 = sbr.rel target = $region3
    $region8: #{tpu_custom_call.1} parent=1 // loop_exit
      _
    %2926 = vsyncpa [#allocation4], 1
    %s2927 = scalar_lea.sflag [#allocation4], 1
    %2928 = vsyncpa %s2927, 1

</llo_original>
